<compile_context>
chip_gen: v5e
topology: v5e:2x2
jax: 0.10.0
libtpu: 0.0.40
codegen_flags: <defaults>
</compile_context>

<pallas_src>
import functools

import jax
import jax.numpy as jnp
from jax.experimental import pallas as pl
from jax.experimental.pallas import tpu as pltpu


def _layernorm(x, gamma, beta, eps=1e-5):
    # f32 elementwise math (keep off the bf16 VPU path for v5e).
    mean = jnp.mean(x, axis=-1, keepdims=True)
    var = jnp.mean((x - mean) ** 2, axis=-1, keepdims=True)
    return (x - mean) * jax.lax.rsqrt(var + eps) * gamma + beta


def encoder_block_kernel(x_ref, g1_ref, be1_ref, wqkv_ref, wo_ref, bo_ref,
                         g2_ref, be2_ref, w1_ref, bf1_ref, w2_ref, bf2_ref,
                         o_ref, xn_s, acc_s, *, n_head):
    bb, T, D = x_ref.shape          # bb = batch elements handled by this block
    hs = D // n_head
    M = bb * T
    h = pl.program_id(1)            # head index (grid axis 1, "arbitrary")

    # ---- head 0: LN1 once per batch block, zero the attention accumulator ----
    @pl.when(h == 0)
    def _init():
        x = x_ref[...].astype(jnp.float32).reshape(M, D)
        xn_s[...] = _layernorm(x, g1_ref[...], be1_ref[...]).astype(jnp.bfloat16)
        acc_s[...] = jnp.zeros_like(acc_s)

    # ---- per-head attention; head selected purely by the BlockSpec index_map ----
    xn = xn_s[...]                                                    # (M, D) bf16
    qkv = jnp.dot(xn, wqkv_ref[0],
                  preferred_element_type=jnp.float32)                 # (M, 3*hs)
    # 1/sqrt(hs) is pre-folded into the Q columns of wqkv at prep time.
    q = qkv[:, :hs].reshape(bb, T, hs).astype(jnp.bfloat16)
    k = qkv[:, hs:2 * hs].reshape(bb, T, hs).astype(jnp.bfloat16)
    v = qkv[:, 2 * hs:].reshape(bb, T, hs).astype(jnp.bfloat16)

    # batched over bb, contract last dims -> no explicit transpose.
    s = jnp.einsum('bqd,bkd->bqk', q, k,
                   preferred_element_type=jnp.float32)                # (bb, T, T)
    s = s - jnp.max(s, axis=-1, keepdims=True)
    p = jnp.exp(s)
    p = p * pl.reciprocal(jnp.sum(p, axis=-1, keepdims=True), approx=True)
    att = jnp.einsum('bqk,bkd->bqd', p.astype(jnp.bfloat16), v,
                     preferred_element_type=jnp.float32)              # (bb, T, hs)

    # accumulate this head's slice of the output projection:
    # concat @ Wo == sum_h att_h @ Wo[h*hs:(h+1)*hs, :]
    acc_s[...] += jnp.dot(att.reshape(M, hs).astype(jnp.bfloat16), wo_ref[0],
                          preferred_element_type=jnp.float32)         # (M, D)

    # ---- last head: residual + LN2 + FFN + residual, single store ----
    @pl.when(h == n_head - 1)
    def _finalize():
        x = x_ref[...].astype(jnp.float32).reshape(M, D)
        x1 = x + acc_s[...] + bo_ref[...]
        xn2 = _layernorm(x1, g2_ref[...], be2_ref[...])
        h1 = jnp.dot(xn2.astype(jnp.bfloat16), w1_ref[...],
                     preferred_element_type=jnp.float32) + bf1_ref[...]
        h1 = jnp.maximum(h1, 0.0)
        ff = jnp.dot(h1.astype(jnp.bfloat16), w2_ref[...],
                     preferred_element_type=jnp.float32) + bf2_ref[...]
        o_ref[...] = (x1 + ff).reshape(bb, T, D).astype(o_ref.dtype)


def prepare_encoder_params(params, n_head):
    """One-time parameter prep (hoisted out of the per-call path).

    Builds a per-head fused QKV weight (n_head, D, 3*hs) with 1/sqrt(hs)
    folded into the Q columns, per-head Wo rows (n_head, hs, D), and casts
    all matmul weights to bf16.  LN params and biases stay f32.
    """
    (g1, be1, wq, wk, wv, wo, bo, g2, be2, w1, bf1, w2, bf2) = params
    D = wq.shape[0]
    assert D % n_head == 0, "d_model must be divisible by n_head"
    hs = D // n_head
    scale = 1.0 / float(hs) ** 0.5

    def per_head_cols(w):                       # (D, D) -> (n_head, D, hs)
        return w.reshape(D, n_head, hs).transpose(1, 0, 2)

    wqkv_h = jnp.concatenate(
        [per_head_cols(wq * scale), per_head_cols(wk), per_head_cols(wv)],
        axis=-1).astype(jnp.bfloat16)           # (n_head, D, 3*hs)
    wo_h = wo.reshape(n_head, hs, D).astype(jnp.bfloat16)

    return dict(
        n_head=n_head,
        g1=g1, be1=be1,
        wqkv_h=wqkv_h, wo_h=wo_h, bo=bo,
        g2=g2, be2=be2,
        w1=w1.astype(jnp.bfloat16), bf1=bf1,
        w2=w2.astype(jnp.bfloat16), bf2=bf2,
    )


def _pick_batch_block(B, T, D, d_ff, vmem_budget_bytes=24 * 1024 * 1024):
    """Largest divisor of B whose per-step activation footprint stays under
    ~half the scoped-VMEM budget, keeping >= 2 blocks (v7x has 2 TensorCores)."""
    def footprint(bb):
        M = bb * T
        act = 4 * M * D * 4          # x / x1 / xn2 / ffn-out f32 slabs
        act += 2 * M * D             # bf16 LN1 cache
        act += 4 * M * D             # f32 attention accumulator
        act += 4 * bb * T * T * 2    # per-head scores + probs (f32)
        act += 4 * M * d_ff          # FFN hidden (f32)
        return act

    best = 1
    for bb in range(1, B + 1):
        if B % bb != 0:
            continue
        if footprint(bb) <= vmem_budget_bytes and (B == 1 or B // bb >= 2):
            best = bb
    return best


def encoder_block(x, prep, *, batch_block=None):
    B, T, D = x.shape
    n_head = prep["n_head"]
    hs = D // n_head
    d_ff = prep["w1"].shape[1]

    bb = batch_block if batch_block is not None else _pick_batch_block(B, T, D, d_ff)
    assert B % bb == 0, "batch_block must divide the batch size"
    nb = B // bb
    M = bb * T

    ins = [x, prep["g1"], prep["be1"], prep["wqkv_h"], prep["wo_h"], prep["bo"],
           prep["g2"], prep["be2"], prep["w1"], prep["bf1"], prep["w2"], prep["bf2"]]

    # Advisory cost estimate so XLA can overlap this call with neighbours.
    flops = int(2 * B * T * D * (4 * D + 2 * d_ff) + 4 * B * T * T * D)
    transcendentals = int(n_head * B * T * T + 3 * B * T)
    bytes_accessed = int(8 * B * T * D                       # x in + out (f32)
                         + 2 * (4 * D * D + 2 * D * d_ff)    # bf16 weights
                         + 4 * (6 * D + 2 * d_ff))           # f32 LN params / biases
    cost = pl.CostEstimate(flops=flops, transcendentals=transcendentals,
                           bytes_accessed=bytes_accessed)

    def build(weight_mode):
        def const_spec(shape):
            nd = len(shape)
            idx = lambda i, h, _nd=nd: (0,) * _nd
            if weight_mode is None:
                return pl.BlockSpec(shape, idx)
            # Constant block index -> single-buffer (halves resident-weight VMEM).
            return pl.BlockSpec(shape, idx, pipeline_mode=weight_mode)

        in_specs = [
            pl.BlockSpec((bb, T, D), lambda i, h: (i, 0, 0)),       # x (batch-tiled)
            const_spec((1, D)),                                     # ln1 gamma
            const_spec((1, D)),                                     # ln1 beta
            pl.BlockSpec((1, D, 3 * hs), lambda i, h: (h, 0, 0)),   # per-head fused QKV
            pl.BlockSpec((1, hs, D), lambda i, h: (h, 0, 0)),       # per-head Wo rows
            const_spec((1, D)),                                     # bo
            const_spec((1, D)),                                     # ln2 gamma
            const_spec((1, D)),                                     # ln2 beta
            const_spec((D, d_ff)),                                  # FFN W1
            const_spec((1, d_ff)),                                  # FFN b1
            const_spec((d_ff, D)),                                  # FFN W2
            const_spec((1, D)),                                     # FFN b2
        ]
        out_specs = pl.BlockSpec((bb, T, D), lambda i, h: (i, 0, 0))

        kernel = functools.partial(encoder_block_kernel, n_head=n_head)
        return pl.pallas_call(
            kernel,
            grid=(nb, n_head),
            in_specs=in_specs,
            out_specs=out_specs,
            out_shape=jax.ShapeDtypeStruct((B, T, D), x.dtype),
            scratch_shapes=[pltpu.VMEM((M, D), jnp.bfloat16),    # LN1(x) cache
                            pltpu.VMEM((M, D), jnp.float32)],    # attention accumulator
            compiler_params=pltpu.CompilerParams(
                dimension_semantics=("parallel", "arbitrary"),
                # 48 MiB: above the 16/32 MiB scoped defaults, ~25% headroom
                # below v7x's 64 MiB physical VMEM.
                vmem_limit_bytes=48 * 1024 * 1024),
            cost_estimate=cost,
        )

    try:
        return build(pl.Buffered(1))(*ins)
    except Exception:
        # TODO(synk): this jax version rejected single-buffered weight specs;
        # fall back to default double-buffering (correctness unaffected).
        return build(None)(*ins)


def reference(x, params, n_head):
    (g1, be1, wq, wk, wv, wo, bo, g2, be2, w1, bf1, w2, bf2) = params

    def ln(z, g, b):
        m = z.mean(-1, keepdims=True)
        v = ((z - m) ** 2).mean(-1, keepdims=True)
        return (z - m) / jnp.sqrt(v + 1e-5) * g + b

    B, T, D = x.shape
    hs = D // n_head
    xn = ln(x, g1, be1)
    q, k, v = xn @ wq, xn @ wk, xn @ wv
    outs = []
    for h in range(n_head):
        sl = slice(h * hs, (h + 1) * hs)
        s = jnp.einsum("btd,bsd->bts", q[..., sl], k[..., sl]) / float(hs) ** 0.5
        p = jax.nn.softmax(s, axis=-1)
        outs.append(jnp.einsum("bts,bsd->btd", p, v[..., sl]))
    attn = jnp.concatenate(outs, axis=-1)
    x1 = x + attn @ wo + bo
    xn2 = ln(x1, g2, be2)
    ff = jnp.maximum(xn2 @ w1 + bf1, 0.0) @ w2 + bf2
    return x1 + ff


if __name__ == "__main__":
    # small shapes consistent with the module: block_size=8 (seq), d_model=32, n_head=4
    B, T, D, n_head = 2, 8, 32, 4
    Dff = 4 * D

    key = jax.random.PRNGKey(0)
    ks = jax.random.split(key, 16)

    def w(k, shape, scale=0.1):
        return (scale * jax.random.normal(k, shape)).astype(jnp.float32)

    params = [
        1.0 + w(ks[0], (1, D)),       # ln1 gamma
        w(ks[1], (1, D)),             # ln1 beta
        w(ks[2], (D, D)),             # Wq  (in, out) — concat of per-head query weights
        w(ks[3], (D, D)),             # Wk
        w(ks[4], (D, D)),             # Wv
        w(ks[5], (D, D)),             # Wo  (attention output projection)
        w(ks[6], (1, D)),             # bo
        1.0 + w(ks[7], (1, D)),       # ln2 gamma
        w(ks[8], (1, D)),             # ln2 beta
        w(ks[9], (D, Dff)),           # FFN W1
        w(ks[10], (1, Dff)),          # FFN b1
        w(ks[11], (Dff, D)),          # FFN W2
        w(ks[12], (1, D)),            # FFN b2
    ]

    x = jax.random.normal(ks[13], (B, T, D), dtype=jnp.float32)

    prep = prepare_encoder_params(params, n_head)   # one-time weight prep
    out = jax.block_until_ready(encoder_block(x, prep))

    ref = jax.block_until_ready(reference(x, params, n_head))
    assert out.shape == (B, T, D)
    assert jnp.allclose(out, ref, atol=5e-2, rtol=5e-2), "mismatch vs JAX reference"

    print("KERNEL_OK")
</pallas_src>

<mosaic_0001>
module attributes {stable_mosaic.version = 11 : i64} {
  func.func @encoder_block_kernel(%arg0: i32, %arg1: i32, %arg2: memref<1x8x32xf32, #tpu.memory_space<vmem>>, %arg3: memref<1x32xf32, #tpu.memory_space<vmem>>, %arg4: memref<1x32xf32, #tpu.memory_space<vmem>>, %arg5: memref<1x32x24xbf16, #tpu.memory_space<vmem>>, %arg6: memref<1x8x32xbf16, #tpu.memory_space<vmem>>, %arg7: memref<1x32xf32, #tpu.memory_space<vmem>>, %arg8: memref<1x32xf32, #tpu.memory_space<vmem>>, %arg9: memref<1x32xf32, #tpu.memory_space<vmem>>, %arg10: memref<32x128xbf16, #tpu.memory_space<vmem>>, %arg11: memref<1x128xf32, #tpu.memory_space<vmem>>, %arg12: memref<128x32xbf16, #tpu.memory_space<vmem>>, %arg13: memref<1x32xf32, #tpu.memory_space<vmem>>, %arg14: memref<1x8x32xf32, #tpu.memory_space<vmem>>, %arg15: memref<8x32xbf16, #tpu.memory_space<vmem>>, %arg16: memref<8x32xf32, #tpu.memory_space<vmem>>) attributes {dimension_semantics = [#tpu.dimension_semantics<parallel>, #tpu.dimension_semantics<arbitrary>], iteration_bounds = array<i64: 2, 4>, scalar_prefetch = 0 : i64, scratch_operands = 2 : i64, tpu.core_type = #tpu.core_type<tc>, window_params = [{transform_indices = @transform_0, window_bounds = array<i64: 1, 8, 32>}, {pipeline_mode = #tpu.pipeline_mode<synchronous>, transform_indices = @transform_1, window_bounds = array<i64: 1, 32>}, {pipeline_mode = #tpu.pipeline_mode<synchronous>, transform_indices = @transform_2, window_bounds = array<i64: 1, 32>}, {transform_indices = @transform_3, window_bounds = array<i64: 1, 32, 24>}, {transform_indices = @transform_4, window_bounds = array<i64: 1, 8, 32>}, {pipeline_mode = #tpu.pipeline_mode<synchronous>, transform_indices = @transform_5, window_bounds = array<i64: 1, 32>}, {pipeline_mode = #tpu.pipeline_mode<synchronous>, transform_indices = @transform_6, window_bounds = array<i64: 1, 32>}, {pipeline_mode = #tpu.pipeline_mode<synchronous>, transform_indices = @transform_7, window_bounds = array<i64: 1, 32>}, {pipeline_mode = #tpu.pipeline_mode<synchronous>, transform_indices = @transform_8, window_bounds = array<i64: 32, 128>}, {pipeline_mode = #tpu.pipeline_mode<synchronous>, transform_indices = @transform_9, window_bounds = array<i64: 1, 128>}, {pipeline_mode = #tpu.pipeline_mode<synchronous>, transform_indices = @transform_10, window_bounds = array<i64: 128, 32>}, {pipeline_mode = #tpu.pipeline_mode<synchronous>, transform_indices = @transform_11, window_bounds = array<i64: 1, 32>}, {transform_indices = @transform_12, window_bounds = array<i64: 1, 8, 32>}]} {
    %c0_i32 = arith.constant 0 : i32
    %0 = arith.cmpi eq, %arg1, %c0_i32 : i32
    %1 = arith.extui %0 : i1 to i32
    %c0_i32_0 = arith.constant 0 : i32
    %2 = arith.cmpi ne, %1, %c0_i32_0 : i32
    scf.if %2 {
      %c0_18 = arith.constant 0 : index
      %c0_19 = arith.constant 0 : index
      %c0_20 = arith.constant 0 : index
      %40 = vector.load %arg2[%c0_18, %c0_19, %c0_20] : memref<1x8x32xf32, #tpu.memory_space<vmem>>, vector<1x8x32xf32>
      %41 = vector.shape_cast %40 : vector<1x8x32xf32> to vector<8x32xf32>
      %c0_21 = arith.constant 0 : index
      %c0_22 = arith.constant 0 : index
      %42 = vector.load %arg3[%c0_21, %c0_22] : memref<1x32xf32, #tpu.memory_space<vmem>>, vector<1x32xf32>
      %c0_23 = arith.constant 0 : index
      %c0_24 = arith.constant 0 : index
      %43 = vector.load %arg4[%c0_23, %c0_24] : memref<1x32xf32, #tpu.memory_space<vmem>>, vector<1x32xf32>
      %cst_25 = arith.constant dense<0.000000e+00> : vector<8xf32>
      %44 = vector.multi_reduction <add>, %41, %cst_25 [1] : vector<8x32xf32> to vector<8xf32>
      %45 = vector.shape_cast %44 : vector<8xf32> to vector<8x1xf32>
      %cst_26 = arith.constant 3.200000e+01 : f32
      %46 = vector.broadcast %cst_26 : f32 to vector<8x1xf32>
      %47 = arith.divf %45, %46 : vector<8x1xf32>
      %48 = vector.broadcast %47 : vector<8x1xf32> to vector<8x32xf32>
      %49 = arith.subf %41, %48 : vector<8x32xf32>
      %50 = arith.mulf %49, %49 : vector<8x32xf32>
      %cst_27 = arith.constant dense<0.000000e+00> : vector<8xf32>
      %51 = vector.multi_reduction <add>, %50, %cst_27 [1] : vector<8x32xf32> to vector<8xf32>
      %52 = vector.shape_cast %51 : vector<8xf32> to vector<8x1xf32>
      %cst_28 = arith.constant 3.200000e+01 : f32
      %53 = vector.broadcast %cst_28 : f32 to vector<8x1xf32>
      %54 = arith.divf %52, %53 : vector<8x1xf32>
      %55 = vector.broadcast %47 : vector<8x1xf32> to vector<8x32xf32>
      %56 = arith.subf %41, %55 : vector<8x32xf32>
      %cst_29 = arith.constant 9.99999974E-6 : f32
      %57 = vector.broadcast %cst_29 : f32 to vector<8x1xf32>
      %58 = arith.addf %54, %57 : vector<8x1xf32>
      %59 = math.rsqrt %58 : vector<8x1xf32>
      %60 = vector.broadcast %59 : vector<8x1xf32> to vector<8x32xf32>
      %61 = arith.mulf %56, %60 : vector<8x32xf32>
      %62 = vector.broadcast %42 : vector<1x32xf32> to vector<8x32xf32>
      %63 = arith.mulf %61, %62 : vector<8x32xf32>
      %64 = vector.broadcast %43 : vector<1x32xf32> to vector<8x32xf32>
      %65 = arith.addf %63, %64 : vector<8x32xf32>
      %66 = arith.truncf %65 : vector<8x32xf32> to vector<8x32xbf16>
      %c0_30 = arith.constant 0 : index
      %c0_31 = arith.constant 0 : index
      %67 = vector.load %arg15[%c0_30, %c0_31] : memref<8x32xbf16, #tpu.memory_space<vmem>>, vector<8x32xbf16>
      tpu.vector_store %arg15[%c0_30, %c0_31], %66 {strides = array<i32>} : memref<8x32xbf16, #tpu.memory_space<vmem>>, vector<8x32xbf16>,
      %cst_32 = arith.constant 0.000000e+00 : f32
      %68 = vector.broadcast %cst_32 : f32 to vector<8x32xf32>
      %c0_33 = arith.constant 0 : index
      %c0_34 = arith.constant 0 : index
      %69 = vector.load %arg16[%c0_33, %c0_34] : memref<8x32xf32, #tpu.memory_space<vmem>>, vector<8x32xf32>
      tpu.vector_store %arg16[%c0_33, %c0_34], %68 {strides = array<i32>} : memref<8x32xf32, #tpu.memory_space<vmem>>, vector<8x32xf32>,
    } else {
    }
    %c0 = arith.constant 0 : index
    %c0_1 = arith.constant 0 : index
    %3 = vector.load %arg15[%c0, %c0_1] : memref<8x32xbf16, #tpu.memory_space<vmem>>, vector<8x32xbf16>
    %c0_2 = arith.constant 0 : index
    %c0_3 = arith.constant 0 : index
    %c0_4 = arith.constant 0 : index
    %4 = vector.load %arg5[%c0_2, %c0_3, %c0_4] : memref<1x32x24xbf16, #tpu.memory_space<vmem>>, vector<1x32x24xbf16>
    %5 = vector.shape_cast %4 : vector<1x32x24xbf16> to vector<32x24xbf16>
    %cst = arith.constant dense<0.000000e+00> : vector<8x24xf32>
    %6 = tpu.matmul %3, %5, %cst {dimension_numbers = #tpu.dot_dimension_numbers<[1], [0], [0], [1], [0, 0, 1, 1], [], []>} : vector<8x32xbf16>, vector<32x24xbf16>, vector<8x24xf32> -> vector<8x24xf32>
    %7 = vector.extract_strided_slice %6 {offsets = [0, 0], sizes = [8, 8], strides = [1, 1]} : vector<8x24xf32> to vector<8x8xf32>
    %8 = vector.shape_cast %7 : vector<8x8xf32> to vector<1x8x8xf32>
    %9 = arith.truncf %8 : vector<1x8x8xf32> to vector<1x8x8xbf16>
    %10 = vector.extract_strided_slice %6 {offsets = [0, 8], sizes = [8, 8], strides = [1, 1]} : vector<8x24xf32> to vector<8x8xf32>
    %11 = vector.shape_cast %10 : vector<8x8xf32> to vector<1x8x8xf32>
    %12 = arith.truncf %11 : vector<1x8x8xf32> to vector<1x8x8xbf16>
    %13 = vector.extract_strided_slice %6 {offsets = [0, 16], sizes = [8, 8], strides = [1, 1]} : vector<8x24xf32> to vector<8x8xf32>
    %14 = vector.shape_cast %13 : vector<8x8xf32> to vector<1x8x8xf32>
    %15 = arith.truncf %14 : vector<1x8x8xf32> to vector<1x8x8xbf16>
    "tpu.trace_start"() <{level = 10 : i32, message = "bqd,bkd->bqk"}> : () -> ()
    %cst_5 = arith.constant dense<0.000000e+00> : vector<1x8x8xf32>
    %16 = tpu.matmul %9, %12, %cst_5 {dimension_numbers = #tpu.dot_dimension_numbers<[2], [2], [1], [1], [0, 0, 0, 1, 1, 1], [0], [0]>} : vector<1x8x8xbf16>, vector<1x8x8xbf16>, vector<1x8x8xf32> -> vector<1x8x8xf32>
    "tpu.trace_stop"() : () -> ()
    %cst_6 = arith.constant dense<0xFF800000> : vector<1x8xf32>
    %17 = vector.multi_reduction <maximumf>, %16, %cst_6 [2] : vector<1x8x8xf32> to vector<1x8xf32>
    %18 = vector.shape_cast %17 : vector<1x8xf32> to vector<1x8x1xf32>
    %19 = vector.broadcast %18 : vector<1x8x1xf32> to vector<1x8x8xf32>
    %20 = arith.subf %16, %19 : vector<1x8x8xf32>
    %21 = math.exp %20 : vector<1x8x8xf32>
    %cst_7 = arith.constant dense<0.000000e+00> : vector<1x8xf32>
    %22 = vector.multi_reduction <add>, %21, %cst_7 [2] : vector<1x8x8xf32> to vector<1x8xf32>
    %23 = vector.shape_cast %22 : vector<1x8xf32> to vector<1x8x1xf32>
    %24 = tpu.reciprocal %23 {approx = true} : vector<1x8x1xf32> -> vector<1x8x1xf32>
    %25 = vector.broadcast %24 : vector<1x8x1xf32> to vector<1x8x8xf32>
    %26 = arith.mulf %21, %25 : vector<1x8x8xf32>
    %27 = arith.truncf %26 : vector<1x8x8xf32> to vector<1x8x8xbf16>
    "tpu.trace_start"() <{level = 10 : i32, message = "bqk,bkd->bqd"}> : () -> ()
    %cst_8 = arith.constant dense<0.000000e+00> : vector<1x8x8xf32>
    %28 = tpu.matmul %27, %15, %cst_8 {dimension_numbers = #tpu.dot_dimension_numbers<[2], [1], [1], [2], [0, 0, 0, 1, 1, 2], [0], [0]>} : vector<1x8x8xbf16>, vector<1x8x8xbf16>, vector<1x8x8xf32> -> vector<1x8x8xf32>
    "tpu.trace_stop"() : () -> ()
    %c0_9 = arith.constant 0 : index
    %c0_10 = arith.constant 0 : index
    %29 = vector.load %arg16[%c0_9, %c0_10] : memref<8x32xf32, #tpu.memory_space<vmem>>, vector<8x32xf32>
    %30 = vector.shape_cast %28 : vector<1x8x8xf32> to vector<8x8xf32>
    %31 = arith.truncf %30 : vector<8x8xf32> to vector<8x8xbf16>
    %c0_11 = arith.constant 0 : index
    %c0_12 = arith.constant 0 : index
    %c0_13 = arith.constant 0 : index
    %32 = vector.load %arg6[%c0_11, %c0_12, %c0_13] : memref<1x8x32xbf16, #tpu.memory_space<vmem>>, vector<1x8x32xbf16>
    %33 = vector.shape_cast %32 : vector<1x8x32xbf16> to vector<8x32xbf16>
    %cst_14 = arith.constant dense<0.000000e+00> : vector<8x32xf32>
    %34 = tpu.matmul %31, %33, %cst_14 {dimension_numbers = #tpu.dot_dimension_numbers<[1], [0], [0], [1], [0, 0, 1, 1], [], []>} : vector<8x8xbf16>, vector<8x32xbf16>, vector<8x32xf32> -> vector<8x32xf32>
    %35 = arith.addf %29, %34 : vector<8x32xf32>
    %c0_15 = arith.constant 0 : index
    %c0_16 = arith.constant 0 : index
    %36 = vector.load %arg16[%c0_15, %c0_16] : memref<8x32xf32, #tpu.memory_space<vmem>>, vector<8x32xf32>
    tpu.vector_store %arg16[%c0_15, %c0_16], %35 {strides = array<i32>} : memref<8x32xf32, #tpu.memory_space<vmem>>, vector<8x32xf32>,
    %c3_i32 = arith.constant 3 : i32
    %37 = arith.cmpi eq, %arg1, %c3_i32 : i32
    %38 = arith.extui %37 : i1 to i32
    %c0_i32_17 = arith.constant 0 : i32
    %39 = arith.cmpi ne, %38, %c0_i32_17 : i32
    scf.if %39 {
      %c0_18 = arith.constant 0 : index
      %c0_19 = arith.constant 0 : index
      %c0_20 = arith.constant 0 : index
      %40 = vector.load %arg2[%c0_18, %c0_19, %c0_20] : memref<1x8x32xf32, #tpu.memory_space<vmem>>, vector<1x8x32xf32>
      %41 = vector.shape_cast %40 : vector<1x8x32xf32> to vector<8x32xf32>
      %c0_21 = arith.constant 0 : index
      %c0_22 = arith.constant 0 : index
      %42 = vector.load %arg16[%c0_21, %c0_22] : memref<8x32xf32, #tpu.memory_space<vmem>>, vector<8x32xf32>
      %43 = arith.addf %41, %42 : vector<8x32xf32>
      %c0_23 = arith.constant 0 : index
      %c0_24 = arith.constant 0 : index
      %44 = vector.load %arg7[%c0_23, %c0_24] : memref<1x32xf32, #tpu.memory_space<vmem>>, vector<1x32xf32>
      %45 = vector.broadcast %44 : vector<1x32xf32> to vector<8x32xf32>
      %46 = arith.addf %43, %45 : vector<8x32xf32>
      %c0_25 = arith.constant 0 : index
      %c0_26 = arith.constant 0 : index
      %47 = vector.load %arg8[%c0_25, %c0_26] : memref<1x32xf32, #tpu.memory_space<vmem>>, vector<1x32xf32>
      %c0_27 = arith.constant 0 : index
      %c0_28 = arith.constant 0 : index
      %48 = vector.load %arg9[%c0_27, %c0_28] : memref<1x32xf32, #tpu.memory_space<vmem>>, vector<1x32xf32>
      %cst_29 = arith.constant dense<0.000000e+00> : vector<8xf32>
      %49 = vector.multi_reduction <add>, %46, %cst_29 [1] : vector<8x32xf32> to vector<8xf32>
      %50 = vector.shape_cast %49 : vector<8xf32> to vector<8x1xf32>
      %cst_30 = arith.constant 3.200000e+01 : f32
      %51 = vector.broadcast %cst_30 : f32 to vector<8x1xf32>
      %52 = arith.divf %50, %51 : vector<8x1xf32>
      %53 = vector.broadcast %52 : vector<8x1xf32> to vector<8x32xf32>
      %54 = arith.subf %46, %53 : vector<8x32xf32>
      %55 = arith.mulf %54, %54 : vector<8x32xf32>
      %cst_31 = arith.constant dense<0.000000e+00> : vector<8xf32>
      %56 = vector.multi_reduction <add>, %55, %cst_31 [1] : vector<8x32xf32> to vector<8xf32>
      %57 = vector.shape_cast %56 : vector<8xf32> to vector<8x1xf32>
      %cst_32 = arith.constant 3.200000e+01 : f32
      %58 = vector.broadcast %cst_32 : f32 to vector<8x1xf32>
      %59 = arith.divf %57, %58 : vector<8x1xf32>
      %60 = vector.broadcast %52 : vector<8x1xf32> to vector<8x32xf32>
      %61 = arith.subf %46, %60 : vector<8x32xf32>
      %cst_33 = arith.constant 9.99999974E-6 : f32
      %62 = vector.broadcast %cst_33 : f32 to vector<8x1xf32>
      %63 = arith.addf %59, %62 : vector<8x1xf32>
      %64 = math.rsqrt %63 : vector<8x1xf32>
      %65 = vector.broadcast %64 : vector<8x1xf32> to vector<8x32xf32>
      %66 = arith.mulf %61, %65 : vector<8x32xf32>
      %67 = vector.broadcast %47 : vector<1x32xf32> to vector<8x32xf32>
      %68 = arith.mulf %66, %67 : vector<8x32xf32>
      %69 = vector.broadcast %48 : vector<1x32xf32> to vector<8x32xf32>
      %70 = arith.addf %68, %69 : vector<8x32xf32>
      %71 = arith.truncf %70 : vector<8x32xf32> to vector<8x32xbf16>
      %c0_34 = arith.constant 0 : index
      %c0_35 = arith.constant 0 : index
      %72 = vector.load %arg10[%c0_34, %c0_35] : memref<32x128xbf16, #tpu.memory_space<vmem>>, vector<32x128xbf16>
      %cst_36 = arith.constant dense<0.000000e+00> : vector<8x128xf32>
      %73 = tpu.matmul %71, %72, %cst_36 {dimension_numbers = #tpu.dot_dimension_numbers<[1], [0], [0], [1], [0, 0, 1, 1], [], []>} : vector<8x32xbf16>, vector<32x128xbf16>, vector<8x128xf32> -> vector<8x128xf32>
      %c0_37 = arith.constant 0 : index
      %c0_38 = arith.constant 0 : index
      %74 = vector.load %arg11[%c0_37, %c0_38] : memref<1x128xf32, #tpu.memory_space<vmem>>, vector<1x128xf32>
      %75 = vector.broadcast %74 : vector<1x128xf32> to vector<8x128xf32>
      %76 = arith.addf %73, %75 : vector<8x128xf32>
      %cst_39 = arith.constant 0.000000e+00 : f32
      %77 = vector.broadcast %cst_39 : f32 to vector<8x128xf32>
      %78 = arith.maximumf %76, %77 : vector<8x128xf32>
      %79 = arith.truncf %78 : vector<8x128xf32> to vector<8x128xbf16>
      %c0_40 = arith.constant 0 : index
      %c0_41 = arith.constant 0 : index
      %80 = vector.load %arg12[%c0_40, %c0_41] : memref<128x32xbf16, #tpu.memory_space<vmem>>, vector<128x32xbf16>
      %cst_42 = arith.constant dense<0.000000e+00> : vector<8x32xf32>
      %81 = tpu.matmul %79, %80, %cst_42 {dimension_numbers = #tpu.dot_dimension_numbers<[1], [0], [0], [1], [0, 0, 1, 1], [], []>} : vector<8x128xbf16>, vector<128x32xbf16>, vector<8x32xf32> -> vector<8x32xf32>
      %c0_43 = arith.constant 0 : index
      %c0_44 = arith.constant 0 : index
      %82 = vector.load %arg13[%c0_43, %c0_44] : memref<1x32xf32, #tpu.memory_space<vmem>>, vector<1x32xf32>
      %83 = vector.broadcast %82 : vector<1x32xf32> to vector<8x32xf32>
      %84 = arith.addf %81, %83 : vector<8x32xf32>
      %85 = arith.addf %46, %84 : vector<8x32xf32>
      %86 = vector.shape_cast %85 : vector<8x32xf32> to vector<1x8x32xf32>
      %c0_45 = arith.constant 0 : index
      %c0_46 = arith.constant 0 : index
      %c0_47 = arith.constant 0 : index
      %87 = vector.load %arg14[%c0_45, %c0_46, %c0_47] : memref<1x8x32xf32, #tpu.memory_space<vmem>>, vector<1x8x32xf32>
      tpu.vector_store %arg14[%c0_45, %c0_46, %c0_47], %86 {strides = array<i32>} : memref<1x8x32xf32, #tpu.memory_space<vmem>>, vector<1x8x32xf32>,
    } else {
    }
    return
  }
  func.func @transform_0(%arg0: i32, %arg1: i32) -> (i32, i32, i32) {
    %c0_i32 = arith.constant 0 : i32
    %c0_i32_0 = arith.constant 0 : i32
    %c0_i32_1 = arith.constant 0 : i32
    return %arg0, %c0_i32, %c0_i32_0 : i32, i32, i32
  }
  func.func @transform_1(%arg0: i32, %arg1: i32) -> (i32, i32) {
    %c0_i32 = arith.constant 0 : i32
    %c0_i32_0 = arith.constant 0 : i32
    %c0_i32_1 = arith.constant 0 : i32
    return %c0_i32, %c0_i32_0 : i32, i32
  }
  func.func @transform_2(%arg0: i32, %arg1: i32) -> (i32, i32) {
    %c0_i32 = arith.constant 0 : i32
    %c0_i32_0 = arith.constant 0 : i32
    %c0_i32_1 = arith.constant 0 : i32
    return %c0_i32, %c0_i32_0 : i32, i32
  }
  func.func @transform_3(%arg0: i32, %arg1: i32) -> (i32, i32, i32) {
    %c0_i32 = arith.constant 0 : i32
    %c0_i32_0 = arith.constant 0 : i32
    %c0_i32_1 = arith.constant 0 : i32
    return %arg1, %c0_i32, %c0_i32_0 : i32, i32, i32
  }
  func.func @transform_4(%arg0: i32, %arg1: i32) -> (i32, i32, i32) {
    %c0_i32 = arith.constant 0 : i32
    %c0_i32_0 = arith.constant 0 : i32
    %c0_i32_1 = arith.constant 0 : i32
    return %arg1, %c0_i32, %c0_i32_0 : i32, i32, i32
  }
  func.func @transform_5(%arg0: i32, %arg1: i32) -> (i32, i32) {
    %c0_i32 = arith.constant 0 : i32
    %c0_i32_0 = arith.constant 0 : i32
    %c0_i32_1 = arith.constant 0 : i32
    return %c0_i32, %c0_i32_0 : i32, i32
  }
  func.func @transform_6(%arg0: i32, %arg1: i32) -> (i32, i32) {
    %c0_i32 = arith.constant 0 : i32
    %c0_i32_0 = arith.constant 0 : i32
    %c0_i32_1 = arith.constant 0 : i32
    return %c0_i32, %c0_i32_0 : i32, i32
  }
  func.func @transform_7(%arg0: i32, %arg1: i32) -> (i32, i32) {
    %c0_i32 = arith.constant 0 : i32
    %c0_i32_0 = arith.constant 0 : i32
    %c0_i32_1 = arith.constant 0 : i32
    return %c0_i32, %c0_i32_0 : i32, i32
  }
  func.func @transform_8(%arg0: i32, %arg1: i32) -> (i32, i32) {
    %c0_i32 = arith.constant 0 : i32
    %c0_i32_0 = arith.constant 0 : i32
    %c0_i32_1 = arith.constant 0 : i32
    return %c0_i32, %c0_i32_0 : i32, i32
  }
  func.func @transform_9(%arg0: i32, %arg1: i32) -> (i32, i32) {
    %c0_i32 = arith.constant 0 : i32
    %c0_i32_0 = arith.constant 0 : i32
    %c0_i32_1 = arith.constant 0 : i32
    return %c0_i32, %c0_i32_0 : i32, i32
  }
  func.func @transform_10(%arg0: i32, %arg1: i32) -> (i32, i32) {
    %c0_i32 = arith.constant 0 : i32
    %c0_i32_0 = arith.constant 0 : i32
    %c0_i32_1 = arith.constant 0 : i32
    return %c0_i32, %c0_i32_0 : i32, i32
  }
  func.func @transform_11(%arg0: i32, %arg1: i32) -> (i32, i32) {
    %c0_i32 = arith.constant 0 : i32
    %c0_i32_0 = arith.constant 0 : i32
    %c0_i32_1 = arith.constant 0 : i32
    return %c0_i32, %c0_i32_0 : i32, i32
  }
  func.func @transform_12(%arg0: i32, %arg1: i32) -> (i32, i32, i32) {
    %c0_i32 = arith.constant 0 : i32
    %c0_i32_0 = arith.constant 0 : i32
    %c0_i32_1 = arith.constant 0 : i32
    return %arg0, %c0_i32, %c0_i32_0 : i32, i32, i32
  }
}

module attributes {stable_mosaic.version = 11 : i64} {
  func.func @encoder_block_kernel(%arg0: i32, %arg1: i32, %arg2: memref<1x8x32xf32, #tpu.memory_space<vmem>>, %arg3: memref<1x32xf32, #tpu.memory_space<vmem>>, %arg4: memref<1x32xf32, #tpu.memory_space<vmem>>, %arg5: memref<1x32x24xbf16, #tpu.memory_space<vmem>>, %arg6: memref<1x8x32xbf16, #tpu.memory_space<vmem>>, %arg7: memref<1x32xf32, #tpu.memory_space<vmem>>, %arg8: memref<1x32xf32, #tpu.memory_space<vmem>>, %arg9: memref<1x32xf32, #tpu.memory_space<vmem>>, %arg10: memref<32x128xbf16, #tpu.memory_space<vmem>>, %arg11: memref<1x128xf32, #tpu.memory_space<vmem>>, %arg12: memref<128x32xbf16, #tpu.memory_space<vmem>>, %arg13: memref<1x32xf32, #tpu.memory_space<vmem>>, %arg14: memref<1x8x32xf32, #tpu.memory_space<vmem>>, %arg15: memref<8x32xbf16, #tpu.memory_space<vmem>>, %arg16: memref<8x32xf32, #tpu.memory_space<vmem>>) attributes {dimension_semantics = [#tpu.dimension_semantics<parallel>, #tpu.dimension_semantics<arbitrary>], iteration_bounds = array<i64: 2, 4>, scalar_prefetch = 0 : i64, scratch_operands = 2 : i64, tpu.core_type = #tpu.core_type<tc>, window_params = [{transform_indices = @transform_0, window_bounds = array<i64: 1, 8, 32>}, {pipeline_mode = #tpu.pipeline_mode<synchronous>, transform_indices = @transform_1, window_bounds = array<i64: 1, 32>}, {pipeline_mode = #tpu.pipeline_mode<synchronous>, transform_indices = @transform_2, window_bounds = array<i64: 1, 32>}, {transform_indices = @transform_3, window_bounds = array<i64: 1, 32, 24>}, {transform_indices = @transform_4, window_bounds = array<i64: 1, 8, 32>}, {pipeline_mode = #tpu.pipeline_mode<synchronous>, transform_indices = @transform_5, window_bounds = array<i64: 1, 32>}, {pipeline_mode = #tpu.pipeline_mode<synchronous>, transform_indices = @transform_6, window_bounds = array<i64: 1, 32>}, {pipeline_mode = #tpu.pipeline_mode<synchronous>, transform_indices = @transform_7, window_bounds = array<i64: 1, 32>}, {pipeline_mode = #tpu.pipeline_mode<synchronous>, transform_indices = @transform_8, window_bounds = array<i64: 32, 128>}, {pipeline_mode = #tpu.pipeline_mode<synchronous>, transform_indices = @transform_9, window_bounds = array<i64: 1, 128>}, {pipeline_mode = #tpu.pipeline_mode<synchronous>, transform_indices = @transform_10, window_bounds = array<i64: 128, 32>}, {pipeline_mode = #tpu.pipeline_mode<synchronous>, transform_indices = @transform_11, window_bounds = array<i64: 1, 32>}, {transform_indices = @transform_12, window_bounds = array<i64: 1, 8, 32>}]} {
    %c0_i32 = arith.constant 0 : i32
    %0 = arith.cmpi eq, %arg1, %c0_i32 : i32
    %1 = arith.extui %0 : i1 to i32
    %c0_i32_0 = arith.constant 0 : i32
    %2 = arith.cmpi ne, %1, %c0_i32_0 : i32
    scf.if %2 {
      %c0_18 = arith.constant 0 : index
      %c0_19 = arith.constant 0 : index
      %c0_20 = arith.constant 0 : index
      %40 = vector.load %arg2[%c0_18, %c0_19, %c0_20] : memref<1x8x32xf32, #tpu.memory_space<vmem>>, vector<1x8x32xf32>
      %41 = vector.shape_cast %40 : vector<1x8x32xf32> to vector<8x32xf32>
      %c0_21 = arith.constant 0 : index
      %c0_22 = arith.constant 0 : index
      %42 = vector.load %arg3[%c0_21, %c0_22] : memref<1x32xf32, #tpu.memory_space<vmem>>, vector<1x32xf32>
      %c0_23 = arith.constant 0 : index
      %c0_24 = arith.constant 0 : index
      %43 = vector.load %arg4[%c0_23, %c0_24] : memref<1x32xf32, #tpu.memory_space<vmem>>, vector<1x32xf32>
      %cst_25 = arith.constant dense<0.000000e+00> : vector<8xf32>
      %44 = vector.multi_reduction <add>, %41, %cst_25 [1] : vector<8x32xf32> to vector<8xf32>
      %45 = vector.shape_cast %44 : vector<8xf32> to vector<8x1xf32>
      %cst_26 = arith.constant 3.200000e+01 : f32
      %46 = vector.broadcast %cst_26 : f32 to vector<8x1xf32>
      %47 = arith.divf %45, %46 : vector<8x1xf32>
      %48 = vector.broadcast %47 : vector<8x1xf32> to vector<8x32xf32>
      %49 = arith.subf %41, %48 : vector<8x32xf32>
      %50 = arith.mulf %49, %49 : vector<8x32xf32>
      %cst_27 = arith.constant dense<0.000000e+00> : vector<8xf32>
      %51 = vector.multi_reduction <add>, %50, %cst_27 [1] : vector<8x32xf32> to vector<8xf32>
      %52 = vector.shape_cast %51 : vector<8xf32> to vector<8x1xf32>
      %cst_28 = arith.constant 3.200000e+01 : f32
      %53 = vector.broadcast %cst_28 : f32 to vector<8x1xf32>
      %54 = arith.divf %52, %53 : vector<8x1xf32>
      %55 = vector.broadcast %47 : vector<8x1xf32> to vector<8x32xf32>
      %56 = arith.subf %41, %55 : vector<8x32xf32>
      %cst_29 = arith.constant 9.99999974E-6 : f32
      %57 = vector.broadcast %cst_29 : f32 to vector<8x1xf32>
      %58 = arith.addf %54, %57 : vector<8x1xf32>
      %59 = math.rsqrt %58 : vector<8x1xf32>
      %60 = vector.broadcast %59 : vector<8x1xf32> to vector<8x32xf32>
      %61 = arith.mulf %56, %60 : vector<8x32xf32>
      %62 = vector.broadcast %42 : vector<1x32xf32> to vector<8x32xf32>
      %63 = arith.mulf %61, %62 : vector<8x32xf32>
      %64 = vector.broadcast %43 : vector<1x32xf32> to vector<8x32xf32>
      %65 = arith.addf %63, %64 : vector<8x32xf32>
      %66 = arith.truncf %65 : vector<8x32xf32> to vector<8x32xbf16>
      %c0_30 = arith.constant 0 : index
      %c0_31 = arith.constant 0 : index
      %67 = vector.load %arg15[%c0_30, %c0_31] : memref<8x32xbf16, #tpu.memory_space<vmem>>, vector<8x32xbf16>
      tpu.vector_store %arg15[%c0_30, %c0_31], %66 {strides = array<i32>} : memref<8x32xbf16, #tpu.memory_space<vmem>>, vector<8x32xbf16>,
      %cst_32 = arith.constant 0.000000e+00 : f32
      %68 = vector.broadcast %cst_32 : f32 to vector<8x32xf32>
      %c0_33 = arith.constant 0 : index
      %c0_34 = arith.constant 0 : index
      %69 = vector.load %arg16[%c0_33, %c0_34] : memref<8x32xf32, #tpu.memory_space<vmem>>, vector<8x32xf32>
      tpu.vector_store %arg16[%c0_33, %c0_34], %68 {strides = array<i32>} : memref<8x32xf32, #tpu.memory_space<vmem>>, vector<8x32xf32>,
    } else {
    }
    %c0 = arith.constant 0 : index
    %c0_1 = arith.constant 0 : index
    %3 = vector.load %arg15[%c0, %c0_1] : memref<8x32xbf16, #tpu.memory_space<vmem>>, vector<8x32xbf16>
    %c0_2 = arith.constant 0 : index
    %c0_3 = arith.constant 0 : index
    %c0_4 = arith.constant 0 : index
    %4 = vector.load %arg5[%c0_2, %c0_3, %c0_4] : memref<1x32x24xbf16, #tpu.memory_space<vmem>>, vector<1x32x24xbf16>
    %5 = vector.shape_cast %4 : vector<1x32x24xbf16> to vector<32x24xbf16>
    %cst = arith.constant dense<0.000000e+00> : vector<8x24xf32>
    %6 = tpu.matmul %3, %5, %cst {dimension_numbers = #tpu.dot_dimension_numbers<[1], [0], [0], [1], [0, 0, 1, 1], [], []>} : vector<8x32xbf16>, vector<32x24xbf16>, vector<8x24xf32> -> vector<8x24xf32>
    %7 = vector.extract_strided_slice %6 {offsets = [0, 0], sizes = [8, 8], strides = [1, 1]} : vector<8x24xf32> to vector<8x8xf32>
    %8 = vector.shape_cast %7 : vector<8x8xf32> to vector<1x8x8xf32>
    %9 = arith.truncf %8 : vector<1x8x8xf32> to vector<1x8x8xbf16>
    %10 = vector.extract_strided_slice %6 {offsets = [0, 8], sizes = [8, 8], strides = [1, 1]} : vector<8x24xf32> to vector<8x8xf32>
    %11 = vector.shape_cast %10 : vector<8x8xf32> to vector<1x8x8xf32>
    %12 = arith.truncf %11 : vector<1x8x8xf32> to vector<1x8x8xbf16>
    %13 = vector.extract_strided_slice %6 {offsets = [0, 16], sizes = [8, 8], strides = [1, 1]} : vector<8x24xf32> to vector<8x8xf32>
    %14 = vector.shape_cast %13 : vector<8x8xf32> to vector<1x8x8xf32>
    %15 = arith.truncf %14 : vector<1x8x8xf32> to vector<1x8x8xbf16>
    "tpu.trace_start"() <{level = 10 : i32, message = "bqd,bkd->bqk"}> : () -> ()
    %cst_5 = arith.constant dense<0.000000e+00> : vector<1x8x8xf32>
    %16 = tpu.matmul %9, %12, %cst_5 {dimension_numbers = #tpu.dot_dimension_numbers<[2], [2], [1], [1], [0, 0, 0, 1, 1, 1], [0], [0]>} : vector<1x8x8xbf16>, vector<1x8x8xbf16>, vector<1x8x8xf32> -> vector<1x8x8xf32>
    "tpu.trace_stop"() : () -> ()
    %cst_6 = arith.constant dense<0xFF800000> : vector<1x8xf32>
    %17 = vector.multi_reduction <maximumf>, %16, %cst_6 [2] : vector<1x8x8xf32> to vector<1x8xf32>
    %18 = vector.shape_cast %17 : vector<1x8xf32> to vector<1x8x1xf32>
    %19 = vector.broadcast %18 : vector<1x8x1xf32> to vector<1x8x8xf32>
    %20 = arith.subf %16, %19 : vector<1x8x8xf32>
    %21 = math.exp %20 : vector<1x8x8xf32>
    %cst_7 = arith.constant dense<0.000000e+00> : vector<1x8xf32>
    %22 = vector.multi_reduction <add>, %21, %cst_7 [2] : vector<1x8x8xf32> to vector<1x8xf32>
    %23 = vector.shape_cast %22 : vector<1x8xf32> to vector<1x8x1xf32>
    %24 = tpu.reciprocal %23 {approx = true} : vector<1x8x1xf32> -> vector<1x8x1xf32>
    %25 = vector.broadcast %24 : vector<1x8x1xf32> to vector<1x8x8xf32>
    %26 = arith.mulf %21, %25 : vector<1x8x8xf32>
    %27 = arith.truncf %26 : vector<1x8x8xf32> to vector<1x8x8xbf16>
    "tpu.trace_start"() <{level = 10 : i32, message = "bqk,bkd->bqd"}> : () -> ()
    %cst_8 = arith.constant dense<0.000000e+00> : vector<1x8x8xf32>
    %28 = tpu.matmul %27, %15, %cst_8 {dimension_numbers = #tpu.dot_dimension_numbers<[2], [1], [1], [2], [0, 0, 0, 1, 1, 2], [0], [0]>} : vector<1x8x8xbf16>, vector<1x8x8xbf16>, vector<1x8x8xf32> -> vector<1x8x8xf32>
    "tpu.trace_stop"() : () -> ()
    %c0_9 = arith.constant 0 : index
    %c0_10 = arith.constant 0 : index
    %29 = vector.load %arg16[%c0_9, %c0_10] : memref<8x32xf32, #tpu.memory_space<vmem>>, vector<8x32xf32>
    %30 = vector.shape_cast %28 : vector<1x8x8xf32> to vector<8x8xf32>
    %31 = arith.truncf %30 : vector<8x8xf32> to vector<8x8xbf16>
    %c0_11 = arith.constant 0 : index
    %c0_12 = arith.constant 0 : index
    %c0_13 = arith.constant 0 : index
    %32 = vector.load %arg6[%c0_11, %c0_12, %c0_13] : memref<1x8x32xbf16, #tpu.memory_space<vmem>>, vector<1x8x32xbf16>
    %33 = vector.shape_cast %32 : vector<1x8x32xbf16> to vector<8x32xbf16>
    %cst_14 = arith.constant dense<0.000000e+00> : vector<8x32xf32>
    %34 = tpu.matmul %31, %33, %cst_14 {dimension_numbers = #tpu.dot_dimension_numbers<[1], [0], [0], [1], [0, 0, 1, 1], [], []>} : vector<8x8xbf16>, vector<8x32xbf16>, vector<8x32xf32> -> vector<8x32xf32>
    %35 = arith.addf %29, %34 : vector<8x32xf32>
    %c0_15 = arith.constant 0 : index
    %c0_16 = arith.constant 0 : index
    %36 = vector.load %arg16[%c0_15, %c0_16] : memref<8x32xf32, #tpu.memory_space<vmem>>, vector<8x32xf32>
    tpu.vector_store %arg16[%c0_15, %c0_16], %35 {strides = array<i32>} : memref<8x32xf32, #tpu.memory_space<vmem>>, vector<8x32xf32>,
    %c3_i32 = arith.constant 3 : i32
    %37 = arith.cmpi eq, %arg1, %c3_i32 : i32
    %38 = arith.extui %37 : i1 to i32
    %c0_i32_17 = arith.constant 0 : i32
    %39 = arith.cmpi ne, %38, %c0_i32_17 : i32
    scf.if %39 {
      %c0_18 = arith.constant 0 : index
      %c0_19 = arith.constant 0 : index
      %c0_20 = arith.constant 0 : index
      %40 = vector.load %arg2[%c0_18, %c0_19, %c0_20] : memref<1x8x32xf32, #tpu.memory_space<vmem>>, vector<1x8x32xf32>
      %41 = vector.shape_cast %40 : vector<1x8x32xf32> to vector<8x32xf32>
      %c0_21 = arith.constant 0 : index
      %c0_22 = arith.constant 0 : index
      %42 = vector.load %arg16[%c0_21, %c0_22] : memref<8x32xf32, #tpu.memory_space<vmem>>, vector<8x32xf32>
      %43 = arith.addf %41, %42 : vector<8x32xf32>
      %c0_23 = arith.constant 0 : index
      %c0_24 = arith.constant 0 : index
      %44 = vector.load %arg7[%c0_23, %c0_24] : memref<1x32xf32, #tpu.memory_space<vmem>>, vector<1x32xf32>
      %45 = vector.broadcast %44 : vector<1x32xf32> to vector<8x32xf32>
      %46 = arith.addf %43, %45 : vector<8x32xf32>
      %c0_25 = arith.constant 0 : index
      %c0_26 = arith.constant 0 : index
      %47 = vector.load %arg8[%c0_25, %c0_26] : memref<1x32xf32, #tpu.memory_space<vmem>>, vector<1x32xf32>
      %c0_27 = arith.constant 0 : index
      %c0_28 = arith.constant 0 : index
      %48 = vector.load %arg9[%c0_27, %c0_28] : memref<1x32xf32, #tpu.memory_space<vmem>>, vector<1x32xf32>
      %cst_29 = arith.constant dense<0.000000e+00> : vector<8xf32>
      %49 = vector.multi_reduction <add>, %46, %cst_29 [1] : vector<8x32xf32> to vector<8xf32>
      %50 = vector.shape_cast %49 : vector<8xf32> to vector<8x1xf32>
      %cst_30 = arith.constant 3.200000e+01 : f32
      %51 = vector.broadcast %cst_30 : f32 to vector<8x1xf32>
      %52 = arith.divf %50, %51 : vector<8x1xf32>
      %53 = vector.broadcast %52 : vector<8x1xf32> to vector<8x32xf32>
      %54 = arith.subf %46, %53 : vector<8x32xf32>
      %55 = arith.mulf %54, %54 : vector<8x32xf32>
      %cst_31 = arith.constant dense<0.000000e+00> : vector<8xf32>
      %56 = vector.multi_reduction <add>, %55, %cst_31 [1] : vector<8x32xf32> to vector<8xf32>
      %57 = vector.shape_cast %56 : vector<8xf32> to vector<8x1xf32>
      %cst_32 = arith.constant 3.200000e+01 : f32
      %58 = vector.broadcast %cst_32 : f32 to vector<8x1xf32>
      %59 = arith.divf %57, %58 : vector<8x1xf32>
      %60 = vector.broadcast %52 : vector<8x1xf32> to vector<8x32xf32>
      %61 = arith.subf %46, %60 : vector<8x32xf32>
      %cst_33 = arith.constant 9.99999974E-6 : f32
      %62 = vector.broadcast %cst_33 : f32 to vector<8x1xf32>
      %63 = arith.addf %59, %62 : vector<8x1xf32>
      %64 = math.rsqrt %63 : vector<8x1xf32>
      %65 = vector.broadcast %64 : vector<8x1xf32> to vector<8x32xf32>
      %66 = arith.mulf %61, %65 : vector<8x32xf32>
      %67 = vector.broadcast %47 : vector<1x32xf32> to vector<8x32xf32>
      %68 = arith.mulf %66, %67 : vector<8x32xf32>
      %69 = vector.broadcast %48 : vector<1x32xf32> to vector<8x32xf32>
      %70 = arith.addf %68, %69 : vector<8x32xf32>
      %71 = arith.truncf %70 : vector<8x32xf32> to vector<8x32xbf16>
      %c0_34 = arith.constant 0 : index
      %c0_35 = arith.constant 0 : index
      %72 = vector.load %arg10[%c0_34, %c0_35] : memref<32x128xbf16, #tpu.memory_space<vmem>>, vector<32x128xbf16>
      %cst_36 = arith.constant dense<0.000000e+00> : vector<8x128xf32>
      %73 = tpu.matmul %71, %72, %cst_36 {dimension_numbers = #tpu.dot_dimension_numbers<[1], [0], [0], [1], [0, 0, 1, 1], [], []>} : vector<8x32xbf16>, vector<32x128xbf16>, vector<8x128xf32> -> vector<8x128xf32>
      %c0_37 = arith.constant 0 : index
      %c0_38 = arith.constant 0 : index
      %74 = vector.load %arg11[%c0_37, %c0_38] : memref<1x128xf32, #tpu.memory_space<vmem>>, vector<1x128xf32>
      %75 = vector.broadcast %74 : vector<1x128xf32> to vector<8x128xf32>
      %76 = arith.addf %73, %75 : vector<8x128xf32>
      %cst_39 = arith.constant 0.000000e+00 : f32
      %77 = vector.broadcast %cst_39 : f32 to vector<8x128xf32>
      %78 = arith.maximumf %76, %77 : vector<8x128xf32>
      %79 = arith.truncf %78 : vector<8x128xf32> to vector<8x128xbf16>
      %c0_40 = arith.constant 0 : index
      %c0_41 = arith.constant 0 : index
      %80 = vector.load %arg12[%c0_40, %c0_41] : memref<128x32xbf16, #tpu.memory_space<vmem>>, vector<128x32xbf16>
      %cst_42 = arith.constant dense<0.000000e+00> : vector<8x32xf32>
      %81 = tpu.matmul %79, %80, %cst_42 {dimension_numbers = #tpu.dot_dimension_numbers<[1], [0], [0], [1], [0, 0, 1, 1], [], []>} : vector<8x128xbf16>, vector<128x32xbf16>, vector<8x32xf32> -> vector<8x32xf32>
      %c0_43 = arith.constant 0 : index
      %c0_44 = arith.constant 0 : index
      %82 = vector.load %arg13[%c0_43, %c0_44] : memref<1x32xf32, #tpu.memory_space<vmem>>, vector<1x32xf32>
      %83 = vector.broadcast %82 : vector<1x32xf32> to vector<8x32xf32>
      %84 = arith.addf %81, %83 : vector<8x32xf32>
      %85 = arith.addf %46, %84 : vector<8x32xf32>
      %86 = vector.shape_cast %85 : vector<8x32xf32> to vector<1x8x32xf32>
      %c0_45 = arith.constant 0 : index
      %c0_46 = arith.constant 0 : index
      %c0_47 = arith.constant 0 : index
      %87 = vector.load %arg14[%c0_45, %c0_46, %c0_47] : memref<1x8x32xf32, #tpu.memory_space<vmem>>, vector<1x8x32xf32>
      tpu.vector_store %arg14[%c0_45, %c0_46, %c0_47], %86 {strides = array<i32>} : memref<1x8x32xf32, #tpu.memory_space<vmem>>, vector<1x8x32xf32>,
    } else {
    }
    return
  }
  func.func @transform_0(%arg0: i32, %arg1: i32) -> (i32, i32, i32) {
    %c0_i32 = arith.constant 0 : i32
    %c0_i32_0 = arith.constant 0 : i32
    %c0_i32_1 = arith.constant 0 : i32
    return %arg0, %c0_i32, %c0_i32_0 : i32, i32, i32
  }
  func.func @transform_1(%arg0: i32, %arg1: i32) -> (i32, i32) {
    %c0_i32 = arith.constant 0 : i32
    %c0_i32_0 = arith.constant 0 : i32
    %c0_i32_1 = arith.constant 0 : i32
    return %c0_i32, %c0_i32_0 : i32, i32
  }
  func.func @transform_2(%arg0: i32, %arg1: i32) -> (i32, i32) {
    %c0_i32 = arith.constant 0 : i32
    %c0_i32_0 = arith.constant 0 : i32
    %c0_i32_1 = arith.constant 0 : i32
    return %c0_i32, %c0_i32_0 : i32, i32
  }
  func.func @transform_3(%arg0: i32, %arg1: i32) -> (i32, i32, i32) {
    %c0_i32 = arith.constant 0 : i32
    %c0_i32_0 = arith.constant 0 : i32
    %c0_i32_1 = arith.constant 0 : i32
    return %arg1, %c0_i32, %c0_i32_0 : i32, i32, i32
  }
  func.func @transform_4(%arg0: i32, %arg1: i32) -> (i32, i32, i32) {
    %c0_i32 = arith.constant 0 : i32
    %c0_i32_0 = arith.constant 0 : i32
    %c0_i32_1 = arith.constant 0 : i32
    return %arg1, %c0_i32, %c0_i32_0 : i32, i32, i32
  }
  func.func @transform_5(%arg0: i32, %arg1: i32) -> (i32, i32) {
    %c0_i32 = arith.constant 0 : i32
    %c0_i32_0 = arith.constant 0 : i32
    %c0_i32_1 = arith.constant 0 : i32
    return %c0_i32, %c0_i32_0 : i32, i32
  }
  func.func @transform_6(%arg0: i32, %arg1: i32) -> (i32, i32) {
    %c0_i32 = arith.constant 0 : i32
    %c0_i32_0 = arith.constant 0 : i32
    %c0_i32_1 = arith.constant 0 : i32
    return %c0_i32, %c0_i32_0 : i32, i32
  }
  func.func @transform_7(%arg0: i32, %arg1: i32) -> (i32, i32) {
    %c0_i32 = arith.constant 0 : i32
    %c0_i32_0 = arith.constant 0 : i32
    %c0_i32_1 = arith.constant 0 : i32
    return %c0_i32, %c0_i32_0 : i32, i32
  }
  func.func @transform_8(%arg0: i32, %arg1: i32) -> (i32, i32) {
    %c0_i32 = arith.constant 0 : i32
    %c0_i32_0 = arith.constant 0 : i32
    %c0_i32_1 = arith.constant 0 : i32
    return %c0_i32, %c0_i32_0 : i32, i32
  }
  func.func @transform_9(%arg0: i32, %arg1: i32) -> (i32, i32) {
    %c0_i32 = arith.constant 0 : i32
    %c0_i32_0 = arith.constant 0 : i32
    %c0_i32_1 = arith.constant 0 : i32
    return %c0_i32, %c0_i32_0 : i32, i32
  }
  func.func @transform_10(%arg0: i32, %arg1: i32) -> (i32, i32) {
    %c0_i32 = arith.constant 0 : i32
    %c0_i32_0 = arith.constant 0 : i32
    %c0_i32_1 = arith.constant 0 : i32
    return %c0_i32, %c0_i32_0 : i32, i32
  }
  func.func @transform_11(%arg0: i32, %arg1: i32) -> (i32, i32) {
    %c0_i32 = arith.constant 0 : i32
    %c0_i32_0 = arith.constant 0 : i32
    %c0_i32_1 = arith.constant 0 : i32
    return %c0_i32, %c0_i32_0 : i32, i32
  }
  func.func @transform_12(%arg0: i32, %arg1: i32) -> (i32, i32, i32) {
    %c0_i32 = arith.constant 0 : i32
    %c0_i32_0 = arith.constant 0 : i32
    %c0_i32_1 = arith.constant 0 : i32
    return %arg0, %c0_i32, %c0_i32_0 : i32, i32, i32
  }
}

</mosaic_0001>

<llo_original>
// kernel: tpu_custom_call.1
$region0: #{tpu_custom_call.1}
  #allocation0 [shape = 'u32[]', space=smem, size = 0x4, offset = 0x4, fixed_abs, tag = 'smem constant byte address 0x4 - core index']
  #allocation1 [shape = 'u32[72,128]{1,0:T(1,128)}', space=vmem, size = 0x9000, scoped, tag = 'internal scratch']
  #allocation2 [shape = 'bf16[8,32]{1,0:T(8,128)(2,1)}', space=vmem, size = 0x800, scoped, tag = 'scratch operand']
  #allocation3 [shape = 'f32[8,32]{1,0:T(8,128)}', space=vmem, size = 0x1000, scoped, tag = 'scratch operand']
  %s0 = inlined_call_operand.vmem [shape: f32[2,8,32], index: 0, kind: input, shape index: {}]
  %s1 = inlined_call_operand.vmem [shape: f32[1,32], index: 1, kind: input, shape index: {}]
  %s2 = inlined_call_operand.vmem [shape: f32[1,32], index: 2, kind: input, shape index: {}]
  %s3 = inlined_call_operand.vmem [shape: bf16[4,32,24], index: 3, kind: input, shape index: {}]
  %s4 = inlined_call_operand.vmem [shape: bf16[4,8,32], index: 4, kind: input, shape index: {}]
  %s5 = inlined_call_operand.vmem [shape: f32[1,32], index: 5, kind: input, shape index: {}]
  %s6 = inlined_call_operand.vmem [shape: f32[1,32], index: 6, kind: input, shape index: {}]
  %s7 = inlined_call_operand.vmem [shape: f32[1,32], index: 7, kind: input, shape index: {}]
  %s8 = inlined_call_operand.vmem [shape: bf16[32,128], index: 8, kind: input, shape index: {}]
  %s9 = inlined_call_operand.vmem [shape: f32[1,128], index: 9, kind: input, shape index: {}]
  %s10 = inlined_call_operand.vmem [shape: bf16[128,32], index: 10, kind: input, shape index: {}]
  %s11 = inlined_call_operand.vmem [shape: f32[1,32], index: 11, kind: input, shape index: {}]
  %s12 = inlined_call_operand.hbm [shape: f32[2,8,32], index: 12, kind: output, shape index: {}]
  %s13 = sld [smem:[#allocation0]]
  $region89: #{tpu_custom_call.1} parent=0
    _
  %s15 = ssub.s32 1, %s13
  %s16 = scalar_select 0, %s15, %s13
  $region1: #{tpu_custom_call.1} parent=0
    #allocation4 [shape = 'u8[8192]{0}', space=vmem, size = 0x2000, scoped, tag = 'output window, operand 0']
    #allocation5 [shape = 's32[2]{0}', space=sflag, size = 0x8, scoped, tag = 'scoped memory for tpu_custom_call.1']
    %17 = vsyncpa [#allocation5], 0
    %s18 = scalar_lea.sflag [#allocation5], 1
    %19 = vsyncpa %s18, 0
    loop: start=0, step=1, limit=10
    $region2: #{tpu_custom_call.1} parent=1 // loop_pre_header
      _
    $region3: #{tpu_custom_call.1} parent=1 // loop_header
      %s21 = sphi 0, %s25
      %p22 = scmp.ge.s32.totalorder %s21, 10
      %s28 = sphi 0, %s40
      %s29 = sphi 0, %s36
      %s30 = sphi 0, %s28
      %s31 = sphi 0, %s29
      %s32 = sphi 0, %s30
      %s33 = sphi 0, %s31
      %s43 = sphi 0, %s45
      %s46 = sphi 0, %s43
      %s47 = sphi 0, %s46
      %s63 = sphi 0, %s47
      %s67 = sphi 0, %s67
      %s69 = sphi 0, %s67
      %s70 = sphi 0, %s69
      %s84 = sphi 0, %s70
      %s88 = sphi 0, %s88
      %s90 = sphi 0, %s88
      %s91 = sphi 0, %s90
      %s105 = sphi 0, %s91
      %s111 = sphi 0, %s113
      %s114 = sphi 0, %s111
      %s115 = sphi 0, %s114
      %s131 = sphi 0, %s115
      %s137 = sphi 0, %s139
      %s140 = sphi 0, %s137
      %s141 = sphi 0, %s140
      %s157 = sphi 0, %s141
      %s161 = sphi 0, %s161
      %s163 = sphi 0, %s161
      %s164 = sphi 0, %s163
      %s178 = sphi 0, %s164
      %s182 = sphi 0, %s182
      %s184 = sphi 0, %s182
      %s185 = sphi 0, %s184
      %s199 = sphi 0, %s185
      %s203 = sphi 0, %s203
      %s205 = sphi 0, %s203
      %s206 = sphi 0, %s205
      %s220 = sphi 0, %s206
      %s224 = sphi 0, %s224
      %s226 = sphi 0, %s224
      %s227 = sphi 0, %s226
      %s241 = sphi 0, %s227
      %s245 = sphi 0, %s245
      %s247 = sphi 0, %s245
      %s248 = sphi 0, %s247
      %s262 = sphi 0, %s248
      %s266 = sphi 0, %s266
      %s268 = sphi 0, %s266
      %s269 = sphi 0, %s268
      %s283 = sphi 0, %s269
      %s287 = sphi 0, %s287
      %s289 = sphi 0, %s287
      %s290 = sphi 0, %s289
      %s304 = sphi 0, %s290
      %s310 = sphi 0, %s312
      %s313 = sphi 0, %s310
      %s314 = sphi 0, %s313
      %s330 = sphi 0, %s314
    $region4: #{tpu_custom_call.1} parent=1 // loop_header_branch
      %24 = sbr.rel (%p22) target = $region8
    $region5: #{tpu_custom_call.1} parent=1 // loop_body
      %s26 = ssub.s32 %s21, 1
      %s27 = ssub.s32 %s21, 2
      %s34 = sadd.s32 1, %s29
      %p35 = scmp.ge.s32.totalorder %s34, 4
      %s36 = scalar_select %p35, 0, %s34
      %s37 = sadd.s32 1, %s28
      %s38 = scalar_select %p35, %s37, %s28
      %p39 = scmp.ge.s32.totalorder %s38, 2
      %s40 = scalar_select %p39, 0, %s38
      %s41 = ssub.s32 %s28, %s40
      %p42 = scmp.eq.s32.totalorder %s41, 0
      %s44 = sadd.s32 %s43, 1
      %s45 = scalar_select %p42, %s43, %s44
      %p48 = pneg %p42
      %p49 = scmp.eq.s32.totalorder %s21, 7
      %p50 = por %p48, %p49
      %p51 = scmp.ne.s32.totalorder %s43, %s46
      %p52 = scmp.eq.s32.totalorder %s21, 0
      %p53 = por %p51, %p52
      %p54 = scmp.ne.s32.totalorder %s43, %s46
      %p55 = scmp.eq.s32.totalorder %s26, 7
      %p56 = por %p54, %p55
      %p57 = scmp.ne.s32.totalorder %s46, %s47
      %p58 = scmp.eq.s32.totalorder %s26, 0
      %p59 = por %p57, %p58
      %p60 = scmp.ne.s32.totalorder %s46, %s47
      %p61 = scmp.eq.s32.totalorder %s27, 7
      %p62 = por %p60, %p61
      %p64 = scmp.ne.s32.totalorder %s47, %s63
      %p65 = scmp.eq.s32.totalorder %s27, 0
      %p66 = por %p64, %p65
      %s68 = sadd.s32 %s67, 1
      %p71 = scmp.eq.s32.totalorder %s21, 7
      %p72 = scmp.ne.s32.totalorder %s67, %s69
      %p73 = scmp.eq.s32.totalorder %s21, 0
      %p74 = por %p72, %p73
      %p75 = scmp.ne.s32.totalorder %s67, %s69
      %p76 = scmp.eq.s32.totalorder %s26, 7
      %p77 = por %p75, %p76
      %p78 = scmp.ne.s32.totalorder %s69, %s70
      %p79 = scmp.eq.s32.totalorder %s26, 0
      %p80 = por %p78, %p79
      %p81 = scmp.ne.s32.totalorder %s69, %s70
      %p82 = scmp.eq.s32.totalorder %s27, 7
      %p83 = por %p81, %p82
      %p85 = scmp.ne.s32.totalorder %s70, %s84
      %p86 = scmp.eq.s32.totalorder %s27, 0
      %p87 = por %p85, %p86
      %s89 = sadd.s32 %s88, 1
      %p92 = scmp.eq.s32.totalorder %s21, 7
      %p93 = scmp.ne.s32.totalorder %s88, %s90
      %p94 = scmp.eq.s32.totalorder %s21, 0
      %p95 = por %p93, %p94
      %p96 = scmp.ne.s32.totalorder %s88, %s90
      %p97 = scmp.eq.s32.totalorder %s26, 7
      %p98 = por %p96, %p97
      %p99 = scmp.ne.s32.totalorder %s90, %s91
      %p100 = scmp.eq.s32.totalorder %s26, 0
      %p101 = por %p99, %p100
      %p102 = scmp.ne.s32.totalorder %s90, %s91
      %p103 = scmp.eq.s32.totalorder %s27, 7
      %p104 = por %p102, %p103
      %p106 = scmp.ne.s32.totalorder %s91, %s105
      %p107 = scmp.eq.s32.totalorder %s27, 0
      %p108 = por %p106, %p107
      %s109 = ssub.s32 %s29, %s36
      %p110 = scmp.eq.s32.totalorder %s109, 0
      %s112 = sadd.s32 %s111, 1
      %s113 = scalar_select %p110, %s111, %s112
      %p116 = pneg %p110
      %p117 = scmp.eq.s32.totalorder %s21, 7
      %p118 = por %p116, %p117
      %p119 = scmp.ne.s32.totalorder %s111, %s114
      %p120 = scmp.eq.s32.totalorder %s21, 0
      %p121 = por %p119, %p120
      %p122 = scmp.ne.s32.totalorder %s111, %s114
      %p123 = scmp.eq.s32.totalorder %s26, 7
      %p124 = por %p122, %p123
      %p125 = scmp.ne.s32.totalorder %s114, %s115
      %p126 = scmp.eq.s32.totalorder %s26, 0
      %p127 = por %p125, %p126
      %p128 = scmp.ne.s32.totalorder %s114, %s115
      %p129 = scmp.eq.s32.totalorder %s27, 7
      %p130 = por %p128, %p129
      %p132 = scmp.ne.s32.totalorder %s115, %s131
      %p133 = scmp.eq.s32.totalorder %s27, 0
      %p134 = por %p132, %p133
      %s135 = ssub.s32 %s29, %s36
      %p136 = scmp.eq.s32.totalorder %s135, 0
      %s138 = sadd.s32 %s137, 1
      %s139 = scalar_select %p136, %s137, %s138
      %p142 = pneg %p136
      %p143 = scmp.eq.s32.totalorder %s21, 7
      %p144 = por %p142, %p143
      %p145 = scmp.ne.s32.totalorder %s137, %s140
      %p146 = scmp.eq.s32.totalorder %s21, 0
      %p147 = por %p145, %p146
      %p148 = scmp.ne.s32.totalorder %s137, %s140
      %p149 = scmp.eq.s32.totalorder %s26, 7
      %p150 = por %p148, %p149
      %p151 = scmp.ne.s32.totalorder %s140, %s141
      %p152 = scmp.eq.s32.totalorder %s26, 0
      %p153 = por %p151, %p152
      %p154 = scmp.ne.s32.totalorder %s140, %s141
      %p155 = scmp.eq.s32.totalorder %s27, 7
      %p156 = por %p154, %p155
      %p158 = scmp.ne.s32.totalorder %s141, %s157
      %p159 = scmp.eq.s32.totalorder %s27, 0
      %p160 = por %p158, %p159
      %s162 = sadd.s32 %s161, 1
      %p165 = scmp.eq.s32.totalorder %s21, 7
      %p166 = scmp.ne.s32.totalorder %s161, %s163
      %p167 = scmp.eq.s32.totalorder %s21, 0
      %p168 = por %p166, %p167
      %p169 = scmp.ne.s32.totalorder %s161, %s163
      %p170 = scmp.eq.s32.totalorder %s26, 7
      %p171 = por %p169, %p170
      %p172 = scmp.ne.s32.totalorder %s163, %s164
      %p173 = scmp.eq.s32.totalorder %s26, 0
      %p174 = por %p172, %p173
      %p175 = scmp.ne.s32.totalorder %s163, %s164
      %p176 = scmp.eq.s32.totalorder %s27, 7
      %p177 = por %p175, %p176
      %p179 = scmp.ne.s32.totalorder %s164, %s178
      %p180 = scmp.eq.s32.totalorder %s27, 0
      %p181 = por %p179, %p180
      %s183 = sadd.s32 %s182, 1
      %p186 = scmp.eq.s32.totalorder %s21, 7
      %p187 = scmp.ne.s32.totalorder %s182, %s184
      %p188 = scmp.eq.s32.totalorder %s21, 0
      %p189 = por %p187, %p188
      %p190 = scmp.ne.s32.totalorder %s182, %s184
      %p191 = scmp.eq.s32.totalorder %s26, 7
      %p192 = por %p190, %p191
      %p193 = scmp.ne.s32.totalorder %s184, %s185
      %p194 = scmp.eq.s32.totalorder %s26, 0
      %p195 = por %p193, %p194
      %p196 = scmp.ne.s32.totalorder %s184, %s185
      %p197 = scmp.eq.s32.totalorder %s27, 7
      %p198 = por %p196, %p197
      %p200 = scmp.ne.s32.totalorder %s185, %s199
      %p201 = scmp.eq.s32.totalorder %s27, 0
      %p202 = por %p200, %p201
      %s204 = sadd.s32 %s203, 1
      %p207 = scmp.eq.s32.totalorder %s21, 7
      %p208 = scmp.ne.s32.totalorder %s203, %s205
      %p209 = scmp.eq.s32.totalorder %s21, 0
      %p210 = por %p208, %p209
      %p211 = scmp.ne.s32.totalorder %s203, %s205
      %p212 = scmp.eq.s32.totalorder %s26, 7
      %p213 = por %p211, %p212
      %p214 = scmp.ne.s32.totalorder %s205, %s206
      %p215 = scmp.eq.s32.totalorder %s26, 0
      %p216 = por %p214, %p215
      %p217 = scmp.ne.s32.totalorder %s205, %s206
      %p218 = scmp.eq.s32.totalorder %s27, 7
      %p219 = por %p217, %p218
      %p221 = scmp.ne.s32.totalorder %s206, %s220
      %p222 = scmp.eq.s32.totalorder %s27, 0
      %p223 = por %p221, %p222
      %s225 = sadd.s32 %s224, 1
      %p228 = scmp.eq.s32.totalorder %s21, 7
      %p229 = scmp.ne.s32.totalorder %s224, %s226
      %p230 = scmp.eq.s32.totalorder %s21, 0
      %p231 = por %p229, %p230
      %p232 = scmp.ne.s32.totalorder %s224, %s226
      %p233 = scmp.eq.s32.totalorder %s26, 7
      %p234 = por %p232, %p233
      %p235 = scmp.ne.s32.totalorder %s226, %s227
      %p236 = scmp.eq.s32.totalorder %s26, 0
      %p237 = por %p235, %p236
      %p238 = scmp.ne.s32.totalorder %s226, %s227
      %p239 = scmp.eq.s32.totalorder %s27, 7
      %p240 = por %p238, %p239
      %p242 = scmp.ne.s32.totalorder %s227, %s241
      %p243 = scmp.eq.s32.totalorder %s27, 0
      %p244 = por %p242, %p243
      %s246 = sadd.s32 %s245, 1
      %p249 = scmp.eq.s32.totalorder %s21, 7
      %p250 = scmp.ne.s32.totalorder %s245, %s247
      %p251 = scmp.eq.s32.totalorder %s21, 0
      %p252 = por %p250, %p251
      %p253 = scmp.ne.s32.totalorder %s245, %s247
      %p254 = scmp.eq.s32.totalorder %s26, 7
      %p255 = por %p253, %p254
      %p256 = scmp.ne.s32.totalorder %s247, %s248
      %p257 = scmp.eq.s32.totalorder %s26, 0
      %p258 = por %p256, %p257
      %p259 = scmp.ne.s32.totalorder %s247, %s248
      %p260 = scmp.eq.s32.totalorder %s27, 7
      %p261 = por %p259, %p260
      %p263 = scmp.ne.s32.totalorder %s248, %s262
      %p264 = scmp.eq.s32.totalorder %s27, 0
      %p265 = por %p263, %p264
      %s267 = sadd.s32 %s266, 1
      %p270 = scmp.eq.s32.totalorder %s21, 7
      %p271 = scmp.ne.s32.totalorder %s266, %s268
      %p272 = scmp.eq.s32.totalorder %s21, 0
      %p273 = por %p271, %p272
      %p274 = scmp.ne.s32.totalorder %s266, %s268
      %p275 = scmp.eq.s32.totalorder %s26, 7
      %p276 = por %p274, %p275
      %p277 = scmp.ne.s32.totalorder %s268, %s269
      %p278 = scmp.eq.s32.totalorder %s26, 0
      %p279 = por %p277, %p278
      %p280 = scmp.ne.s32.totalorder %s268, %s269
      %p281 = scmp.eq.s32.totalorder %s27, 7
      %p282 = por %p280, %p281
      %p284 = scmp.ne.s32.totalorder %s269, %s283
      %p285 = scmp.eq.s32.totalorder %s27, 0
      %p286 = por %p284, %p285
      %s288 = sadd.s32 %s287, 1
      %p291 = scmp.eq.s32.totalorder %s21, 7
      %p292 = scmp.ne.s32.totalorder %s287, %s289
      %p293 = scmp.eq.s32.totalorder %s21, 0
      %p294 = por %p292, %p293
      %p295 = scmp.ne.s32.totalorder %s287, %s289
      %p296 = scmp.eq.s32.totalorder %s26, 7
      %p297 = por %p295, %p296
      %p298 = scmp.ne.s32.totalorder %s289, %s290
      %p299 = scmp.eq.s32.totalorder %s26, 0
      %p300 = por %p298, %p299
      %p301 = scmp.ne.s32.totalorder %s289, %s290
      %p302 = scmp.eq.s32.totalorder %s27, 7
      %p303 = por %p301, %p302
      %p305 = scmp.ne.s32.totalorder %s290, %s304
      %p306 = scmp.eq.s32.totalorder %s27, 0
      %p307 = por %p305, %p306
      %s308 = ssub.s32 %s28, %s40
      %p309 = scmp.eq.s32.totalorder %s308, 0
      %s311 = sadd.s32 %s310, 1
      %s312 = scalar_select %p309, %s310, %s311
      %p315 = pneg %p309
      %p316 = scmp.eq.s32.totalorder %s21, 7
      %p317 = por %p315, %p316
      %p318 = scmp.ne.s32.totalorder %s310, %s313
      %p319 = scmp.eq.s32.totalorder %s21, 0
      %p320 = por %p318, %p319
      %p321 = scmp.ne.s32.totalorder %s310, %s313
      %p322 = scmp.eq.s32.totalorder %s26, 7
      %p323 = por %p321, %p322
      %p324 = scmp.ne.s32.totalorder %s313, %s314
      %p325 = scmp.eq.s32.totalorder %s26, 0
      %p326 = por %p324, %p325
      %p327 = scmp.ne.s32.totalorder %s313, %s314
      %p328 = scmp.eq.s32.totalorder %s27, 7
      %p329 = por %p327, %p328
      %p331 = scmp.ne.s32.totalorder %s314, %s330
      %p332 = scmp.eq.s32.totalorder %s27, 0
      %p333 = por %p331, %p332
      %p334 = scmp.le.s32.totalorder 1, %s21
      %p335 = scmp.lt.s32.totalorder %s21, 9
      %p336 = pnand %p334, %p335
      %p337 = pneg %p336
      // Predicated region
      $region9: #{tpu_custom_call.1} parent=5 // pred_check
        _
      $region10: #{tpu_custom_call.1} parent=5 // pred_check_branch
        %339 = sbr.rel (%p336) target = $region12
      $region11: #{tpu_custom_call.1} parent=5 // pred_region
        %s340 = ssub.s32 %s21, 1
        // Predicated region
        $region13: #{tpu_custom_call.1} parent=11 // pred_check
          %p341 = pneg %p80
        $region14: #{tpu_custom_call.1} parent=11 // pred_check_branch
          %343 = sbr.rel (%p341) target = $region16
        $region15: #{tpu_custom_call.1} parent=11 // pred_region
          _
        $region16: #{tpu_custom_call.1} parent=11 // pred_fallthru
          _
        // Predicated region
        $region17: #{tpu_custom_call.1} parent=11 // pred_check
          %p344 = pneg %p101
        $region18: #{tpu_custom_call.1} parent=11 // pred_check_branch
          %346 = sbr.rel (%p344) target = $region20
        $region19: #{tpu_custom_call.1} parent=11 // pred_region
          _
        $region20: #{tpu_custom_call.1} parent=11 // pred_fallthru
          _
        // Predicated region
        $region21: #{tpu_custom_call.1} parent=11 // pred_check
          %p347 = pneg %p174
        $region22: #{tpu_custom_call.1} parent=11 // pred_check_branch
          %349 = sbr.rel (%p347) target = $region24
        $region23: #{tpu_custom_call.1} parent=11 // pred_region
          _
        $region24: #{tpu_custom_call.1} parent=11 // pred_fallthru
          _
        // Predicated region
        $region25: #{tpu_custom_call.1} parent=11 // pred_check
          %p350 = pneg %p195
        $region26: #{tpu_custom_call.1} parent=11 // pred_check_branch
          %352 = sbr.rel (%p350) target = $region28
        $region27: #{tpu_custom_call.1} parent=11 // pred_region
          _
        $region28: #{tpu_custom_call.1} parent=11 // pred_fallthru
          _
        // Predicated region
        $region29: #{tpu_custom_call.1} parent=11 // pred_check
          %p353 = pneg %p216
        $region30: #{tpu_custom_call.1} parent=11 // pred_check_branch
          %355 = sbr.rel (%p353) target = $region32
        $region31: #{tpu_custom_call.1} parent=11 // pred_region
          _
        $region32: #{tpu_custom_call.1} parent=11 // pred_fallthru
          _
        // Predicated region
        $region33: #{tpu_custom_call.1} parent=11 // pred_check
          %p356 = pneg %p237
        $region34: #{tpu_custom_call.1} parent=11 // pred_check_branch
          %358 = sbr.rel (%p356) target = $region36
        $region35: #{tpu_custom_call.1} parent=11 // pred_region
          _
        $region36: #{tpu_custom_call.1} parent=11 // pred_fallthru
          _
        // Predicated region
        $region37: #{tpu_custom_call.1} parent=11 // pred_check
          %p359 = pneg %p258
        $region38: #{tpu_custom_call.1} parent=11 // pred_check_branch
          %361 = sbr.rel (%p359) target = $region40
        $region39: #{tpu_custom_call.1} parent=11 // pred_region
          _
        $region40: #{tpu_custom_call.1} parent=11 // pred_fallthru
          _
        // Predicated region
        $region41: #{tpu_custom_call.1} parent=11 // pred_check
          %p362 = pneg %p279
        $region42: #{tpu_custom_call.1} parent=11 // pred_check_branch
          %364 = sbr.rel (%p362) target = $region44
        $region43: #{tpu_custom_call.1} parent=11 // pred_region
          _
        $region44: #{tpu_custom_call.1} parent=11 // pred_fallthru
          _
        // Predicated region
        $region45: #{tpu_custom_call.1} parent=11 // pred_check
          %p365 = pneg %p300
        $region46: #{tpu_custom_call.1} parent=11 // pred_check_branch
          %367 = sbr.rel (%p365) target = $region48
        $region47: #{tpu_custom_call.1} parent=11 // pred_region
          _
        $region48: #{tpu_custom_call.1} parent=11 // pred_fallthru
          _
      $region12: #{tpu_custom_call.1} parent=5 // pred_fallthru
        _
      %p368 = scmp.lt.s32.totalorder %s21, 8
      // Predicated region
      $region49: #{tpu_custom_call.1} parent=5 // pred_check
        %p369 = pneg %p368
      $region50: #{tpu_custom_call.1} parent=5 // pred_check_branch
        %371 = sbr.rel (%p369) target = $region52
      $region51: #{tpu_custom_call.1} parent=5 // pred_region
        // Predicated region
        $region53: #{tpu_custom_call.1} parent=51 // pred_check
          %p372 = pneg %p53
        $region54: #{tpu_custom_call.1} parent=51 // pred_check_branch
          %374 = sbr.rel (%p372) target = $region56
        $region55: #{tpu_custom_call.1} parent=51 // pred_region
          %p375 = scmp.lt.s32.totalorder %s28, 1
          %s376 = scalar_select %p375, %s28, 1
          %s377 = smul.addr %s376, 8
          %s378 = scalar_lea.vmem %s0, %s377
        $region56: #{tpu_custom_call.1} parent=51 // pred_fallthru
          _
        // Predicated region
        $region57: #{tpu_custom_call.1} parent=51 // pred_check
          %p379 = pneg %p121
        $region58: #{tpu_custom_call.1} parent=51 // pred_check_branch
          %381 = sbr.rel (%p379) target = $region60
        $region59: #{tpu_custom_call.1} parent=51 // pred_region
          %p382 = scmp.lt.s32.totalorder %s29, 3
          %s383 = scalar_select %p382, %s29, 3
          %s384 = smul.addr %s383, 4
          %s385 = smul.addr %s384, 4
          %s386 = scalar_lea.vmem %s3, %s385
        $region60: #{tpu_custom_call.1} parent=51 // pred_fallthru
          _
        // Predicated region
        $region61: #{tpu_custom_call.1} parent=51 // pred_check
          %p387 = pneg %p147
        $region62: #{tpu_custom_call.1} parent=51 // pred_check_branch
          %389 = sbr.rel (%p387) target = $region64
        $region63: #{tpu_custom_call.1} parent=51 // pred_region
          %p390 = scmp.lt.s32.totalorder %s29, 3
          %s391 = scalar_select %p390, %s29, 3
          %s392 = smul.addr %s391, 4
          %s393 = scalar_lea.vmem %s4, %s392
        $region64: #{tpu_custom_call.1} parent=51 // pred_fallthru
          _
      $region52: #{tpu_custom_call.1} parent=5 // pred_fallthru
        _
      %p394 = scmp.le.s32.totalorder 1, %s21
      %p395 = scmp.lt.s32.totalorder %s21, 9
      %p396 = pnand %p394, %p395
      %p397 = pneg %p396
      // Predicated region
      $region65: #{tpu_custom_call.1} parent=5 // pred_check
        _
      $region66: #{tpu_custom_call.1} parent=5 // pred_check_branch
        %399 = sbr.rel (%p396) target = $region68
      $region67: #{tpu_custom_call.1} parent=5 // pred_region
        %s400 = ssub.s32 %s21, 1
        %p401 = scmp.lt.s32.totalorder %s30, 1
        %s402 = scalar_select %p401, %s30, 1
        %s403 = smul.addr %s402, 8
        %s404 = scalar_lea.vmem %s0, %s403
        %p405 = pneg %p59
        %p406 = pneg %p56
        %p407 = pneg %p80
        %p408 = pneg %p77
        %p409 = pneg %p101
        %p410 = pneg %p98
        %p411 = scmp.lt.s32.totalorder %s31, 3
        %s412 = scalar_select %p411, %s31, 3
        %s413 = smul.addr %s412, 4
        %s414 = smul.addr %s413, 4
        %s415 = scalar_lea.vmem %s3, %s414
        %p416 = pneg %p127
        %p417 = pneg %p124
        %p418 = scmp.lt.s32.totalorder %s31, 3
        %s419 = scalar_select %p418, %s31, 3
        %s420 = smul.addr %s419, 4
        %s421 = scalar_lea.vmem %s4, %s420
        %p422 = pneg %p153
        %p423 = pneg %p150
        %p424 = pneg %p174
        %p425 = pneg %p171
        %p426 = pneg %p195
        %p427 = pneg %p192
        %p428 = pneg %p216
        %p429 = pneg %p213
        %p430 = pneg %p237
        %p431 = pneg %p234
        %p432 = pneg %p258
        %p433 = pneg %p255
        %p434 = pneg %p279
        %p435 = pneg %p276
        %p436 = pneg %p300
        %p437 = pneg %p297
        %p438 = pneg %p326
        %p439 = pneg %p323
        %s440 = sand.u32 %s313, 1
        %s441 = scalar_lea.sflag [#allocation5], %s440
        %s442 = sand.u32 %s313, 1
        %s443 = smul.addr %s442, 8
        %s444 = scalar_lea.vmem [#allocation4], %s443
        %p445 = scmp.lt.s32.totalorder %s30, 1
        %s446 = scalar_select %p445, %s30, 1
        %s447 = smul.addr %s446, 8
        %s448 = scalar_lea.vmem %s0, %s447
        %p449 = scmp.lt.s32.totalorder %s31, 3
        %s450 = scalar_select %p449, %s31, 3
        %s451 = smul.addr %s450, 4
        %s452 = smul.addr %s451, 4
        %s453 = scalar_lea.vmem %s3, %s452
        %p454 = scmp.lt.s32.totalorder %s31, 3
        %s455 = scalar_select %p454, %s31, 3
        %s456 = smul.addr %s455, 4
        %s457 = scalar_lea.vmem %s4, %s456
        %p459 = scmp.eq.s32.totalorder %s31, 0
        // Predicated region
        $region69: #{tpu_custom_call.1} parent=67 // pred_check
          %p460 = pneg %p459
        $region70: #{tpu_custom_call.1} parent=67 // pred_check_branch
          %462 = sbr.rel (%p460) target = $region72
        $region71: #{tpu_custom_call.1} parent=67 // pred_region
          %v463 = vld [vmem:[%s448] sm:$0xff]
          %v464 = vld [vmem:[%s1] sm:$0x1]
          %v465 = vld [vmem:[%s2] sm:$0x1]
          %vm466 = vcmask 261120
          %v467 = vsel %vm466, %v463, 0.0
          %468 = vadd.xlane.f32.xlu0 %v467
          %v469 = vpop.xlane.xlu0 %468
          %v470 = vrcp.pop 32.0
          %v471 = vmul.f32 32.0, %v470
          %v472 = vsub.f32 1.0, %v471
          %v473 = vmul.f32 %v470, %v472
          %v474 = vadd.f32 %v470, %v473
          %vm475 = vweird.f32 %v470
          %v476 = vsel %vm475, %v470, %v474
          %v477 = vmul.f32 %v469, %v476
          %v478 = vsub.f32 %v463, %v477
          %v479 = vmul.f32 %v478, %v478
          %v480 = vsel %vm466, %v479, 0.0
          %481 = vadd.xlane.f32.xlu0 %v480
          %v482 = vpop.xlane.xlu0 %481
          %v483 = vmul.f32 %v482, %v476
          %v484 = vadd.f32 %v483, 1e-05
          %v485 = vrsqrt.pop %v484
          %v486 = vmul.f32 %v485, %v484
          %v487 = vmul.f32 %v486, %v485
          %v488 = vmul.f32 0.5, %v487
          %v489 = vsub.f32 1.5, %v488
          %v490 = vmul.f32 %v485, %v489
          %vm491 = vweird.f32 %v484
          %vm492 = vweird.f32 %v485
          %vm493 = vmor %vm491, %vm492
          %v494 = vsel %vm493, %v485, %v490
          %v495 = vmul.f32 %v478, %v494
          %v497 = vperm.slane %v464, 0
          %v499 = vmul.f32 %v495, %v497
          %v501 = vperm.slane %v465, 0
          %v503 = vadd.f32 %v499, %v501
          %v504 = vpack.c.bf16 %v503, %v503
          %vm505 = vcmask 257024
          %506 = vst.msk [vmem:[#allocation2] sm:$0xf] %vm505, %v504
          %507 = vst.msk [vmem:[#allocation3] sm:$0xff] %vm466, 0.0
        $region72: #{tpu_custom_call.1} parent=67 // pred_fallthru
          _
        %v508 = vld [vmem:[#allocation2] sm:$0xf]
        %v509 = vld [vmem:[%s453] sm:$0xf]
        %v510 = vld [vmem:[%s453 + $0x4] sm:$0xf]
        %v511 = vld [vmem:[%s453 + $0x8] sm:$0xf]
        %v512 = vld [vmem:[%s453 + $0xc] sm:$0xf]
        %v517 = vunpack.c.l.b16 %v509
        %v518 = vunpack.c.l.b16 %v510
        %v519 = vunpack.c.l.b16 %v511
        %v520 = vunpack.c.l.b16 %v512
        %v521 = vpack.c.b16 %v518, %v517
        %v522 = vpack.c.b16 %v520, %v519
        %vm525 = vcmask 261120
        %v527 = vsel %vm525, %v508, 0
        %529 = vmatpush.bf16.msra.mxu0 0
        %530 = vmatpush.bf16.msra.mxu0 0
        %531 = vmatpush.bf16.msra.mxu0 0
        %532 = vmatpush.bf16.msra.mxu0 0
        %533 = vmatpush.bf16.msra.mxu0 0
        %534 = vmatpush.bf16.msra.mxu0 0
        %535 = vmatpush.bf16.msra.mxu0 %v522
        %536 = vmatpush.bf16.msra.mxu0 %v521
        %537 = vmatmul.bf16.gmra.mxu0 %v527
        %v538 = vpop.f32.mrf.mxu0
        %v539 = vadd.f32 0.0, %v538
        %v540 = vpop.f32.mrf.mxu0
        %541 = vdwg.mxu0
        %v542 = vpack.c.bf16 %v539, %v539
        %v544 = vunpack.c.l.b16 %v542
        %v545 = vpack.c.b16 %v544, %v544
        %546 = vrot.lane.b32.xlu0 %v545, 120
        %v547 = vpop.permute.xlu0 %546
        %vm548 = vcmask 64512
        %v550 = vsel %vm548, %v542, 0
        %v553 = vsel %vm548, %v547, 0
        %555 = vmatpush.bf16.xpose.msra.mxu0 0
        %556 = vmatpush.bf16.xpose.msra.mxu0 0
        %557 = vmatpush.bf16.xpose.msra.mxu0 0
        %558 = vmatpush.bf16.xpose.msra.mxu0 0
        %559 = vmatpush.bf16.xpose.msra.mxu0 0
        %560 = vmatpush.bf16.xpose.msra.mxu0 0
        %561 = vmatpush.bf16.xpose.msra.mxu0 0
        %562 = vmatpush.bf16.xpose.msra.mxu0 %v553
        %563 = vmatmul.bf16.gmra.mxu0 %v550
        %v564 = vpop.f32.mrf.mxu0
        %v565 = vadd.f32 0.0, %v564
        %v566 = vpop.f32.mrf.mxu0
        %567 = vdwg.mxu0
        %v568 = vsel %vm548, %v565, -inf
        %569 = vmax.xlane.f32.xlu0 %v568
        %v570 = vpop.xlane.xlu0 %569
        %v571 = vsub.f32 %v565, %v570
        %v572 = vmul.f32 %v571, 1.442695
        %v573 = vpow.pop %v572
        %v574 = vsel %vm548, %v573, 0.0
        %575 = vadd.xlane.f32.xlu0 %v574
        %v576 = vpop.xlane.xlu0 %575
        %v577 = vrcp.pop %v576
        %v578 = vmul.f32 %v573, %v577
        %v579 = vpack.c.bf16 %v578, %v578
        %580 = vrot.lane.b32.xlu0 %v545, 112
        %v581 = vpop.permute.xlu0 %580
        %v583 = vsel %vm548, %v579, 0
        %vm585 = vcmask 1043456
        %v587 = vsel %vm585, %v581, 0
        %589 = vmatpush.bf16.msra.mxu0 0
        %590 = vmatpush.bf16.msra.mxu0 0
        %591 = vmatpush.bf16.msra.mxu0 0
        %592 = vmatpush.bf16.msra.mxu0 0
        %593 = vmatpush.bf16.msra.mxu0 0
        %594 = vmatpush.bf16.msra.mxu0 0
        %595 = vmatpush.bf16.msra.mxu0 0
        %596 = vmatpush.bf16.msra.mxu0 %v587
        %597 = vmatmul.bf16.gmra.mxu0 %v583
        %v598 = vpop.f32.mrf.mxu0
        %v599 = vadd.f32 0.0, %v598
        %v600 = vpop.f32.mrf.mxu0
        %601 = vdwg.mxu0
        %v602 = vld [vmem:[#allocation3] sm:$0xff]
        %v603 = vpack.c.bf16 %v599, %v599
        %v604 = vld [vmem:[%s457] sm:$0xf]
        %v606 = vsel %vm548, %v603, 0
        %v609 = vsel %vm585, %v604, 0
        %611 = vmatpush.bf16.msra.mxu0 0
        %612 = vmatpush.bf16.msra.mxu0 0
        %613 = vmatpush.bf16.msra.mxu0 0
        %614 = vmatpush.bf16.msra.mxu0 0
        %615 = vmatpush.bf16.msra.mxu0 0
        %616 = vmatpush.bf16.msra.mxu0 0
        %617 = vmatpush.bf16.msra.mxu0 0
        %618 = vmatpush.bf16.msra.mxu0 %v609
        %619 = vmatmul.bf16.gmra.mxu0 %v606
        %v620 = vpop.f32.mrf.mxu0
        %v621 = vadd.f32 0.0, %v620
        %v622 = vpop.f32.mrf.mxu0
        %623 = vdwg.mxu0
        %v624 = vadd.f32 %v602, %v621
        %625 = vst.msk [vmem:[#allocation3] sm:$0xff] %vm525, %v624
        %p626 = scmp.eq.s32.totalorder %s31, 3
        // Predicated region
        $region73: #{tpu_custom_call.1} parent=67 // pred_check
          %p627 = pneg %p626
        $region74: #{tpu_custom_call.1} parent=67 // pred_check_branch
          %629 = sbr.rel (%p627) target = $region76
        $region75: #{tpu_custom_call.1} parent=67 // pred_region
          %v630 = vld [vmem:[%s448] sm:$0xff]
          %v631 = vld [vmem:[#allocation3] sm:$0xff]
          %v632 = vadd.f32 %v630, %v631
          %v633 = vld [vmem:[%s5] sm:$0x1]
          %v635 = vperm.slane %v633, 0
          %v637 = vadd.f32 %v632, %v635
          %v638 = vld [vmem:[%s6] sm:$0x1]
          %v639 = vld [vmem:[%s7] sm:$0x1]
          %v640 = vsel %vm525, %v637, 0.0
          %641 = vadd.xlane.f32.xlu0 %v640
          %v642 = vpop.xlane.xlu0 %641
          %v643 = vrcp.pop 32.0
          %v644 = vmul.f32 32.0, %v643
          %v645 = vsub.f32 1.0, %v644
          %v646 = vmul.f32 %v643, %v645
          %v647 = vadd.f32 %v643, %v646
          %vm648 = vweird.f32 %v643
          %v649 = vsel %vm648, %v643, %v647
          %v650 = vmul.f32 %v642, %v649
          %v651 = vsub.f32 %v637, %v650
          %v652 = vmul.f32 %v651, %v651
          %v653 = vsel %vm525, %v652, 0.0
          %654 = vadd.xlane.f32.xlu0 %v653
          %v655 = vpop.xlane.xlu0 %654
          %v656 = vmul.f32 %v655, %v649
          %v657 = vadd.f32 %v656, 1e-05
          %v658 = vrsqrt.pop %v657
          %v659 = vmul.f32 %v658, %v657
          %v660 = vmul.f32 %v659, %v658
          %v661 = vmul.f32 0.5, %v660
          %v662 = vsub.f32 1.5, %v661
          %v663 = vmul.f32 %v658, %v662
          %vm664 = vweird.f32 %v657
          %vm665 = vweird.f32 %v658
          %vm666 = vmor %vm664, %vm665
          %v667 = vsel %vm666, %v658, %v663
          %v668 = vmul.f32 %v651, %v667
          %v670 = vperm.slane %v638, 0
          %v672 = vmul.f32 %v668, %v670
          %v674 = vperm.slane %v639, 0
          %v676 = vadd.f32 %v672, %v674
          %v677 = vpack.c.bf16 %v676, %v676
          %v678 = vld [vmem:[%s8] sm:$0xf]
          %v679 = vld [vmem:[%s8 + $0x4] sm:$0xf]
          %v680 = vld [vmem:[%s8 + $0x8] sm:$0xf]
          %v681 = vld [vmem:[%s8 + $0xc] sm:$0xf]
          %v682 = vld [vmem:[%s9] sm:$0x1]
          %v684 = vperm.slane %v682, 0
          %v690 = vunpack.c.l.b16 %v678
          %v691 = vunpack.c.l.b16 %v679
          %v692 = vunpack.c.l.b16 %v680
          %v693 = vunpack.c.l.b16 %v681
          %v694 = vpack.c.b16 %v691, %v690
          %v695 = vpack.c.b16 %v693, %v692
          %v699 = vsel %vm525, %v677, 0
          %701 = vmatpush.bf16.msra.mxu0 0
          %702 = vmatpush.bf16.msra.mxu0 0
          %703 = vmatpush.bf16.msra.mxu0 0
          %704 = vmatpush.bf16.msra.mxu0 0
          %705 = vmatpush.bf16.msra.mxu0 0
          %706 = vmatpush.bf16.msra.mxu0 0
          %707 = vmatpush.bf16.msra.mxu0 %v695
          %708 = vmatpush.bf16.msra.mxu0 %v694
          %709 = vmatmul.bf16.gmra.mxu0 %v699
          %v710 = vpop.f32.mrf.mxu0
          %v711 = vadd.f32 %v684, %v710
          %v712 = vpop.f32.mrf.mxu0
          %713 = vdwg.mxu0
          %v714 = vmax.f32 %v711, 0.0
          %v715 = vpack.c.bf16 %v714, %v714
          %v716 = vld [vmem:[%s10] sm:$0xf]
          %v717 = vld [vmem:[%s10 + $0x4] sm:$0xf]
          %v718 = vld [vmem:[%s10 + $0x8] sm:$0xf]
          %v719 = vld [vmem:[%s10 + $0xc] sm:$0xf]
          %v720 = vld [vmem:[%s10 + $0x10] sm:$0xf]
          %v721 = vld [vmem:[%s10 + $0x14] sm:$0xf]
          %v722 = vld [vmem:[%s10 + $0x18] sm:$0xf]
          %v723 = vld [vmem:[%s10 + $0x1c] sm:$0xf]
          %v724 = vld [vmem:[%s10 + $0x20] sm:$0xf]
          %v725 = vld [vmem:[%s10 + $0x24] sm:$0xf]
          %v726 = vld [vmem:[%s10 + $0x28] sm:$0xf]
          %v727 = vld [vmem:[%s10 + $0x2c] sm:$0xf]
          %v728 = vld [vmem:[%s10 + $0x30] sm:$0xf]
          %v729 = vld [vmem:[%s10 + $0x34] sm:$0xf]
          %v730 = vld [vmem:[%s10 + $0x38] sm:$0xf]
          %v731 = vld [vmem:[%s10 + $0x3c] sm:$0xf]
          %v732 = vld [vmem:[%s11] sm:$0x1]
          %v734 = vperm.slane %v732, 0
          %v752 = vunpack.c.l.b16 %v716
          %v753 = vunpack.c.l.b16 %v717
          %v754 = vunpack.c.l.b16 %v718
          %v755 = vunpack.c.l.b16 %v719
          %v756 = vunpack.c.l.b16 %v720
          %v757 = vunpack.c.l.b16 %v721
          %v758 = vunpack.c.l.b16 %v722
          %v759 = vunpack.c.l.b16 %v723
          %v760 = vunpack.c.l.b16 %v724
          %v761 = vunpack.c.l.b16 %v725
          %v762 = vunpack.c.l.b16 %v726
          %v763 = vunpack.c.l.b16 %v727
          %v764 = vunpack.c.l.b16 %v728
          %v765 = vunpack.c.l.b16 %v729
          %v766 = vunpack.c.l.b16 %v730
          %v767 = vunpack.c.l.b16 %v731
          %v768 = vpack.c.b16 %v753, %v752
          %v769 = vpack.c.b16 %v755, %v754
          %v770 = vpack.c.b16 %v757, %v756
          %v771 = vpack.c.b16 %v759, %v758
          %v772 = vpack.c.b16 %v761, %v760
          %v773 = vpack.c.b16 %v763, %v762
          %v774 = vpack.c.b16 %v765, %v764
          %v775 = vpack.c.b16 %v767, %v766
          %784 = vmatpush.bf16.msra.mxu0 %v775
          %785 = vmatpush.bf16.msra.mxu0 %v774
          %786 = vmatpush.bf16.msra.mxu0 %v773
          %787 = vmatpush.bf16.msra.mxu0 %v772
          %788 = vmatpush.bf16.msra.mxu0 %v771
          %789 = vmatpush.bf16.msra.mxu0 %v770
          %790 = vmatpush.bf16.msra.mxu0 %v769
          %791 = vmatpush.bf16.msra.mxu0 %v768
          %792 = vmatmul.bf16.gmra.mxu0 %v715
          %v793 = vpop.f32.mrf.mxu0
          %v794 = vadd.f32 %v734, %v793
          %v795 = vpop.f32.mrf.mxu0
          %796 = vdwg.mxu0
          %v797 = vadd.f32 %v637, %v794
          %798 = vst.msk [vmem:[%s444] sm:$0xff] %vm525, %v797
        $region76: #{tpu_custom_call.1} parent=67 // pred_fallthru
          _
        %s799 = sand.u32 %s313, 1
        %s800 = scalar_lea.sflag [#allocation5], %s799
        %s801 = sand.u32 %s313, 1
        %s802 = smul.addr %s801, 8
        %s803 = scalar_lea.vmem [#allocation4], %s802
        // Predicated region
        $region77: #{tpu_custom_call.1} parent=67 // pred_check
          %p804 = pneg %p323
        $region78: #{tpu_custom_call.1} parent=67 // pred_check_branch
          %806 = sbr.rel (%p804) target = $region80
        $region79: #{tpu_custom_call.1} parent=67 // pred_region
          %808 = vsyncadd %s800, 0
          %s809 = smul.addr %s30, 8
          %s810 = scalar_lea.hbm %s12, %s809
          %s812 = sshll.u32 %s803, 4
          %s813 = int_to_ptr.vmem [resolvable:$true] %s812
          %s814 = sshll.u32 %s810, 4
          %s815 = int_to_ptr.hbm [resolvable:$true] %s814
          %817 = dma.vmem_to_hbm [thread:$0]  %s813, 128, %s815, %s800
        $region80: #{tpu_custom_call.1} parent=67 // pred_fallthru
          _
      $region68: #{tpu_custom_call.1} parent=5 // pred_fallthru
        _
      %p818 = scmp.le.s32.totalorder 2, %s21
      // Predicated region
      $region81: #{tpu_custom_call.1} parent=5 // pred_check
        %p819 = pneg %p818
      $region82: #{tpu_custom_call.1} parent=5 // pred_check_branch
        %821 = sbr.rel (%p819) target = $region84
      $region83: #{tpu_custom_call.1} parent=5 // pred_region
        %s822 = ssub.s32 %s21, 2
        // Predicated region
        $region85: #{tpu_custom_call.1} parent=83 // pred_check
          %p823 = pneg %p329
        $region86: #{tpu_custom_call.1} parent=83 // pred_check_branch
          %825 = sbr.rel (%p823) target = $region88
        $region87: #{tpu_custom_call.1} parent=83 // pred_region
          %s826 = sand.u32 %s314, 1
          %s827 = scalar_lea.sflag [#allocation5], %s826
          %s828 = sand.u32 %s314, 1
          %s829 = smul.addr %s828, 8
          %s830 = scalar_lea.vmem [#allocation4], %s829
          %832 = dma.done %s827, 128
        $region88: #{tpu_custom_call.1} parent=83 // pred_fallthru
          _
      $region84: #{tpu_custom_call.1} parent=5 // pred_fallthru
        _
    $region6: #{tpu_custom_call.1} parent=1 // loop_footer
      %s25 = sadd.s32 1, %s21
    $region7: #{tpu_custom_call.1} parent=1 // loop_footer_branch
      %20 = sbr.rel target = $region3
    $region8: #{tpu_custom_call.1} parent=1 // loop_exit
      _
    %833 = vsyncpa [#allocation5], 1
    %s834 = scalar_lea.sflag [#allocation5], 1
    %835 = vsyncpa %s834, 1

// kernel: tpu_custom_call.1
$region0: #{tpu_custom_call.1}
  #allocation0 [shape = 'u32[]', space=smem, size = 0x4, offset = 0x4, fixed_abs, tag = 'smem constant byte address 0x4 - core index']
  #allocation1 [shape = 'u32[72,128]{1,0:T(1,128)}', space=vmem, size = 0x9000, scoped, tag = 'internal scratch']
  #allocation2 [shape = 'bf16[8,32]{1,0:T(8,128)(2,1)}', space=vmem, size = 0x800, scoped, tag = 'scratch operand']
  #allocation3 [shape = 'f32[8,32]{1,0:T(8,128)}', space=vmem, size = 0x1000, scoped, tag = 'scratch operand']
  %s0 = inlined_call_operand.vmem [shape: f32[2,8,32], index: 0, kind: input, shape index: {}]
  %s1 = inlined_call_operand.vmem [shape: f32[1,32], index: 1, kind: input, shape index: {}]
  %s2 = inlined_call_operand.vmem [shape: f32[1,32], index: 2, kind: input, shape index: {}]
  %s3 = inlined_call_operand.vmem [shape: bf16[4,32,24], index: 3, kind: input, shape index: {}]
  %s4 = inlined_call_operand.vmem [shape: bf16[4,8,32], index: 4, kind: input, shape index: {}]
  %s5 = inlined_call_operand.vmem [shape: f32[1,32], index: 5, kind: input, shape index: {}]
  %s6 = inlined_call_operand.vmem [shape: f32[1,32], index: 6, kind: input, shape index: {}]
  %s7 = inlined_call_operand.vmem [shape: f32[1,32], index: 7, kind: input, shape index: {}]
  %s8 = inlined_call_operand.vmem [shape: bf16[32,128], index: 8, kind: input, shape index: {}]
  %s9 = inlined_call_operand.vmem [shape: f32[1,128], index: 9, kind: input, shape index: {}]
  %s10 = inlined_call_operand.vmem [shape: bf16[128,32], index: 10, kind: input, shape index: {}]
  %s11 = inlined_call_operand.vmem [shape: f32[1,32], index: 11, kind: input, shape index: {}]
  %s12 = inlined_call_operand.hbm [shape: f32[2,8,32], index: 12, kind: output, shape index: {}]
  %s13 = sld [smem:[#allocation0]]
  $region89: #{tpu_custom_call.1} parent=0
    _
  %s15 = ssub.s32 1, %s13
  %s16 = scalar_select 0, %s15, %s13
  $region1: #{tpu_custom_call.1} parent=0
    #allocation4 [shape = 'u8[8192]{0}', space=vmem, size = 0x2000, scoped, tag = 'output window, operand 0']
    #allocation5 [shape = 's32[2]{0}', space=sflag, size = 0x8, scoped, tag = 'scoped memory for tpu_custom_call.1']
    %17 = vsyncpa [#allocation5], 0
    %s18 = scalar_lea.sflag [#allocation5], 1
    %19 = vsyncpa %s18, 0
    loop: start=0, step=1, limit=10
    $region2: #{tpu_custom_call.1} parent=1 // loop_pre_header
      _
    $region3: #{tpu_custom_call.1} parent=1 // loop_header
      %s21 = sphi 0, %s25
      %p22 = scmp.ge.s32.totalorder %s21, 10
      %s28 = sphi 0, %s40
      %s29 = sphi 0, %s36
      %s30 = sphi 0, %s28
      %s31 = sphi 0, %s29
      %s32 = sphi 0, %s30
      %s33 = sphi 0, %s31
      %s43 = sphi 0, %s45
      %s46 = sphi 0, %s43
      %s47 = sphi 0, %s46
      %s63 = sphi 0, %s47
      %s67 = sphi 0, %s67
      %s69 = sphi 0, %s67
      %s70 = sphi 0, %s69
      %s84 = sphi 0, %s70
      %s88 = sphi 0, %s88
      %s90 = sphi 0, %s88
      %s91 = sphi 0, %s90
      %s105 = sphi 0, %s91
      %s111 = sphi 0, %s113
      %s114 = sphi 0, %s111
      %s115 = sphi 0, %s114
      %s131 = sphi 0, %s115
      %s137 = sphi 0, %s139
      %s140 = sphi 0, %s137
      %s141 = sphi 0, %s140
      %s157 = sphi 0, %s141
      %s161 = sphi 0, %s161
      %s163 = sphi 0, %s161
      %s164 = sphi 0, %s163
      %s178 = sphi 0, %s164
      %s182 = sphi 0, %s182
      %s184 = sphi 0, %s182
      %s185 = sphi 0, %s184
      %s199 = sphi 0, %s185
      %s203 = sphi 0, %s203
      %s205 = sphi 0, %s203
      %s206 = sphi 0, %s205
      %s220 = sphi 0, %s206
      %s224 = sphi 0, %s224
      %s226 = sphi 0, %s224
      %s227 = sphi 0, %s226
      %s241 = sphi 0, %s227
      %s245 = sphi 0, %s245
      %s247 = sphi 0, %s245
      %s248 = sphi 0, %s247
      %s262 = sphi 0, %s248
      %s266 = sphi 0, %s266
      %s268 = sphi 0, %s266
      %s269 = sphi 0, %s268
      %s283 = sphi 0, %s269
      %s287 = sphi 0, %s287
      %s289 = sphi 0, %s287
      %s290 = sphi 0, %s289
      %s304 = sphi 0, %s290
      %s310 = sphi 0, %s312
      %s313 = sphi 0, %s310
      %s314 = sphi 0, %s313
      %s330 = sphi 0, %s314
    $region4: #{tpu_custom_call.1} parent=1 // loop_header_branch
      %24 = sbr.rel (%p22) target = $region8
    $region5: #{tpu_custom_call.1} parent=1 // loop_body
      %s26 = ssub.s32 %s21, 1
      %s27 = ssub.s32 %s21, 2
      %s34 = sadd.s32 1, %s29
      %p35 = scmp.ge.s32.totalorder %s34, 4
      %s36 = scalar_select %p35, 0, %s34
      %s37 = sadd.s32 1, %s28
      %s38 = scalar_select %p35, %s37, %s28
      %p39 = scmp.ge.s32.totalorder %s38, 2
      %s40 = scalar_select %p39, 0, %s38
      %s41 = ssub.s32 %s28, %s40
      %p42 = scmp.eq.s32.totalorder %s41, 0
      %s44 = sadd.s32 %s43, 1
      %s45 = scalar_select %p42, %s43, %s44
      %p48 = pneg %p42
      %p49 = scmp.eq.s32.totalorder %s21, 7
      %p50 = por %p48, %p49
      %p51 = scmp.ne.s32.totalorder %s43, %s46
      %p52 = scmp.eq.s32.totalorder %s21, 0
      %p53 = por %p51, %p52
      %p54 = scmp.ne.s32.totalorder %s43, %s46
      %p55 = scmp.eq.s32.totalorder %s26, 7
      %p56 = por %p54, %p55
      %p57 = scmp.ne.s32.totalorder %s46, %s47
      %p58 = scmp.eq.s32.totalorder %s26, 0
      %p59 = por %p57, %p58
      %p60 = scmp.ne.s32.totalorder %s46, %s47
      %p61 = scmp.eq.s32.totalorder %s27, 7
      %p62 = por %p60, %p61
      %p64 = scmp.ne.s32.totalorder %s47, %s63
      %p65 = scmp.eq.s32.totalorder %s27, 0
      %p66 = por %p64, %p65
      %s68 = sadd.s32 %s67, 1
      %p71 = scmp.eq.s32.totalorder %s21, 7
      %p72 = scmp.ne.s32.totalorder %s67, %s69
      %p73 = scmp.eq.s32.totalorder %s21, 0
      %p74 = por %p72, %p73
      %p75 = scmp.ne.s32.totalorder %s67, %s69
      %p76 = scmp.eq.s32.totalorder %s26, 7
      %p77 = por %p75, %p76
      %p78 = scmp.ne.s32.totalorder %s69, %s70
      %p79 = scmp.eq.s32.totalorder %s26, 0
      %p80 = por %p78, %p79
      %p81 = scmp.ne.s32.totalorder %s69, %s70
      %p82 = scmp.eq.s32.totalorder %s27, 7
      %p83 = por %p81, %p82
      %p85 = scmp.ne.s32.totalorder %s70, %s84
      %p86 = scmp.eq.s32.totalorder %s27, 0
      %p87 = por %p85, %p86
      %s89 = sadd.s32 %s88, 1
      %p92 = scmp.eq.s32.totalorder %s21, 7
      %p93 = scmp.ne.s32.totalorder %s88, %s90
      %p94 = scmp.eq.s32.totalorder %s21, 0
      %p95 = por %p93, %p94
      %p96 = scmp.ne.s32.totalorder %s88, %s90
      %p97 = scmp.eq.s32.totalorder %s26, 7
      %p98 = por %p96, %p97
      %p99 = scmp.ne.s32.totalorder %s90, %s91
      %p100 = scmp.eq.s32.totalorder %s26, 0
      %p101 = por %p99, %p100
      %p102 = scmp.ne.s32.totalorder %s90, %s91
      %p103 = scmp.eq.s32.totalorder %s27, 7
      %p104 = por %p102, %p103
      %p106 = scmp.ne.s32.totalorder %s91, %s105
      %p107 = scmp.eq.s32.totalorder %s27, 0
      %p108 = por %p106, %p107
      %s109 = ssub.s32 %s29, %s36
      %p110 = scmp.eq.s32.totalorder %s109, 0
      %s112 = sadd.s32 %s111, 1
      %s113 = scalar_select %p110, %s111, %s112
      %p116 = pneg %p110
      %p117 = scmp.eq.s32.totalorder %s21, 7
      %p118 = por %p116, %p117
      %p119 = scmp.ne.s32.totalorder %s111, %s114
      %p120 = scmp.eq.s32.totalorder %s21, 0
      %p121 = por %p119, %p120
      %p122 = scmp.ne.s32.totalorder %s111, %s114
      %p123 = scmp.eq.s32.totalorder %s26, 7
      %p124 = por %p122, %p123
      %p125 = scmp.ne.s32.totalorder %s114, %s115
      %p126 = scmp.eq.s32.totalorder %s26, 0
      %p127 = por %p125, %p126
      %p128 = scmp.ne.s32.totalorder %s114, %s115
      %p129 = scmp.eq.s32.totalorder %s27, 7
      %p130 = por %p128, %p129
      %p132 = scmp.ne.s32.totalorder %s115, %s131
      %p133 = scmp.eq.s32.totalorder %s27, 0
      %p134 = por %p132, %p133
      %s135 = ssub.s32 %s29, %s36
      %p136 = scmp.eq.s32.totalorder %s135, 0
      %s138 = sadd.s32 %s137, 1
      %s139 = scalar_select %p136, %s137, %s138
      %p142 = pneg %p136
      %p143 = scmp.eq.s32.totalorder %s21, 7
      %p144 = por %p142, %p143
      %p145 = scmp.ne.s32.totalorder %s137, %s140
      %p146 = scmp.eq.s32.totalorder %s21, 0
      %p147 = por %p145, %p146
      %p148 = scmp.ne.s32.totalorder %s137, %s140
      %p149 = scmp.eq.s32.totalorder %s26, 7
      %p150 = por %p148, %p149
      %p151 = scmp.ne.s32.totalorder %s140, %s141
      %p152 = scmp.eq.s32.totalorder %s26, 0
      %p153 = por %p151, %p152
      %p154 = scmp.ne.s32.totalorder %s140, %s141
      %p155 = scmp.eq.s32.totalorder %s27, 7
      %p156 = por %p154, %p155
      %p158 = scmp.ne.s32.totalorder %s141, %s157
      %p159 = scmp.eq.s32.totalorder %s27, 0
      %p160 = por %p158, %p159
      %s162 = sadd.s32 %s161, 1
      %p165 = scmp.eq.s32.totalorder %s21, 7
      %p166 = scmp.ne.s32.totalorder %s161, %s163
      %p167 = scmp.eq.s32.totalorder %s21, 0
      %p168 = por %p166, %p167
      %p169 = scmp.ne.s32.totalorder %s161, %s163
      %p170 = scmp.eq.s32.totalorder %s26, 7
      %p171 = por %p169, %p170
      %p172 = scmp.ne.s32.totalorder %s163, %s164
      %p173 = scmp.eq.s32.totalorder %s26, 0
      %p174 = por %p172, %p173
      %p175 = scmp.ne.s32.totalorder %s163, %s164
      %p176 = scmp.eq.s32.totalorder %s27, 7
      %p177 = por %p175, %p176
      %p179 = scmp.ne.s32.totalorder %s164, %s178
      %p180 = scmp.eq.s32.totalorder %s27, 0
      %p181 = por %p179, %p180
      %s183 = sadd.s32 %s182, 1
      %p186 = scmp.eq.s32.totalorder %s21, 7
      %p187 = scmp.ne.s32.totalorder %s182, %s184
      %p188 = scmp.eq.s32.totalorder %s21, 0
      %p189 = por %p187, %p188
      %p190 = scmp.ne.s32.totalorder %s182, %s184
      %p191 = scmp.eq.s32.totalorder %s26, 7
      %p192 = por %p190, %p191
      %p193 = scmp.ne.s32.totalorder %s184, %s185
      %p194 = scmp.eq.s32.totalorder %s26, 0
      %p195 = por %p193, %p194
      %p196 = scmp.ne.s32.totalorder %s184, %s185
      %p197 = scmp.eq.s32.totalorder %s27, 7
      %p198 = por %p196, %p197
      %p200 = scmp.ne.s32.totalorder %s185, %s199
      %p201 = scmp.eq.s32.totalorder %s27, 0
      %p202 = por %p200, %p201
      %s204 = sadd.s32 %s203, 1
      %p207 = scmp.eq.s32.totalorder %s21, 7
      %p208 = scmp.ne.s32.totalorder %s203, %s205
      %p209 = scmp.eq.s32.totalorder %s21, 0
      %p210 = por %p208, %p209
      %p211 = scmp.ne.s32.totalorder %s203, %s205
      %p212 = scmp.eq.s32.totalorder %s26, 7
      %p213 = por %p211, %p212
      %p214 = scmp.ne.s32.totalorder %s205, %s206
      %p215 = scmp.eq.s32.totalorder %s26, 0
      %p216 = por %p214, %p215
      %p217 = scmp.ne.s32.totalorder %s205, %s206
      %p218 = scmp.eq.s32.totalorder %s27, 7
      %p219 = por %p217, %p218
      %p221 = scmp.ne.s32.totalorder %s206, %s220
      %p222 = scmp.eq.s32.totalorder %s27, 0
      %p223 = por %p221, %p222
      %s225 = sadd.s32 %s224, 1
      %p228 = scmp.eq.s32.totalorder %s21, 7
      %p229 = scmp.ne.s32.totalorder %s224, %s226
      %p230 = scmp.eq.s32.totalorder %s21, 0
      %p231 = por %p229, %p230
      %p232 = scmp.ne.s32.totalorder %s224, %s226
      %p233 = scmp.eq.s32.totalorder %s26, 7
      %p234 = por %p232, %p233
      %p235 = scmp.ne.s32.totalorder %s226, %s227
      %p236 = scmp.eq.s32.totalorder %s26, 0
      %p237 = por %p235, %p236
      %p238 = scmp.ne.s32.totalorder %s226, %s227
      %p239 = scmp.eq.s32.totalorder %s27, 7
      %p240 = por %p238, %p239
      %p242 = scmp.ne.s32.totalorder %s227, %s241
      %p243 = scmp.eq.s32.totalorder %s27, 0
      %p244 = por %p242, %p243
      %s246 = sadd.s32 %s245, 1
      %p249 = scmp.eq.s32.totalorder %s21, 7
      %p250 = scmp.ne.s32.totalorder %s245, %s247
      %p251 = scmp.eq.s32.totalorder %s21, 0
      %p252 = por %p250, %p251
      %p253 = scmp.ne.s32.totalorder %s245, %s247
      %p254 = scmp.eq.s32.totalorder %s26, 7
      %p255 = por %p253, %p254
      %p256 = scmp.ne.s32.totalorder %s247, %s248
      %p257 = scmp.eq.s32.totalorder %s26, 0
      %p258 = por %p256, %p257
      %p259 = scmp.ne.s32.totalorder %s247, %s248
      %p260 = scmp.eq.s32.totalorder %s27, 7
      %p261 = por %p259, %p260
      %p263 = scmp.ne.s32.totalorder %s248, %s262
      %p264 = scmp.eq.s32.totalorder %s27, 0
      %p265 = por %p263, %p264
      %s267 = sadd.s32 %s266, 1
      %p270 = scmp.eq.s32.totalorder %s21, 7
      %p271 = scmp.ne.s32.totalorder %s266, %s268
      %p272 = scmp.eq.s32.totalorder %s21, 0
      %p273 = por %p271, %p272
      %p274 = scmp.ne.s32.totalorder %s266, %s268
      %p275 = scmp.eq.s32.totalorder %s26, 7
      %p276 = por %p274, %p275
      %p277 = scmp.ne.s32.totalorder %s268, %s269
      %p278 = scmp.eq.s32.totalorder %s26, 0
      %p279 = por %p277, %p278
      %p280 = scmp.ne.s32.totalorder %s268, %s269
      %p281 = scmp.eq.s32.totalorder %s27, 7
      %p282 = por %p280, %p281
      %p284 = scmp.ne.s32.totalorder %s269, %s283
      %p285 = scmp.eq.s32.totalorder %s27, 0
      %p286 = por %p284, %p285
      %s288 = sadd.s32 %s287, 1
      %p291 = scmp.eq.s32.totalorder %s21, 7
      %p292 = scmp.ne.s32.totalorder %s287, %s289
      %p293 = scmp.eq.s32.totalorder %s21, 0
      %p294 = por %p292, %p293
      %p295 = scmp.ne.s32.totalorder %s287, %s289
      %p296 = scmp.eq.s32.totalorder %s26, 7
      %p297 = por %p295, %p296
      %p298 = scmp.ne.s32.totalorder %s289, %s290
      %p299 = scmp.eq.s32.totalorder %s26, 0
      %p300 = por %p298, %p299
      %p301 = scmp.ne.s32.totalorder %s289, %s290
      %p302 = scmp.eq.s32.totalorder %s27, 7
      %p303 = por %p301, %p302
      %p305 = scmp.ne.s32.totalorder %s290, %s304
      %p306 = scmp.eq.s32.totalorder %s27, 0
      %p307 = por %p305, %p306
      %s308 = ssub.s32 %s28, %s40
      %p309 = scmp.eq.s32.totalorder %s308, 0
      %s311 = sadd.s32 %s310, 1
      %s312 = scalar_select %p309, %s310, %s311
      %p315 = pneg %p309
      %p316 = scmp.eq.s32.totalorder %s21, 7
      %p317 = por %p315, %p316
      %p318 = scmp.ne.s32.totalorder %s310, %s313
      %p319 = scmp.eq.s32.totalorder %s21, 0
      %p320 = por %p318, %p319
      %p321 = scmp.ne.s32.totalorder %s310, %s313
      %p322 = scmp.eq.s32.totalorder %s26, 7
      %p323 = por %p321, %p322
      %p324 = scmp.ne.s32.totalorder %s313, %s314
      %p325 = scmp.eq.s32.totalorder %s26, 0
      %p326 = por %p324, %p325
      %p327 = scmp.ne.s32.totalorder %s313, %s314
      %p328 = scmp.eq.s32.totalorder %s27, 7
      %p329 = por %p327, %p328
      %p331 = scmp.ne.s32.totalorder %s314, %s330
      %p332 = scmp.eq.s32.totalorder %s27, 0
      %p333 = por %p331, %p332
      %p334 = scmp.le.s32.totalorder 1, %s21
      %p335 = scmp.lt.s32.totalorder %s21, 9
      %p336 = pnand %p334, %p335
      %p337 = pneg %p336
      // Predicated region
      $region9: #{tpu_custom_call.1} parent=5 // pred_check
        _
      $region10: #{tpu_custom_call.1} parent=5 // pred_check_branch
        %339 = sbr.rel (%p336) target = $region12
      $region11: #{tpu_custom_call.1} parent=5 // pred_region
        %s340 = ssub.s32 %s21, 1
        // Predicated region
        $region13: #{tpu_custom_call.1} parent=11 // pred_check
          %p341 = pneg %p80
        $region14: #{tpu_custom_call.1} parent=11 // pred_check_branch
          %343 = sbr.rel (%p341) target = $region16
        $region15: #{tpu_custom_call.1} parent=11 // pred_region
          _
        $region16: #{tpu_custom_call.1} parent=11 // pred_fallthru
          _
        // Predicated region
        $region17: #{tpu_custom_call.1} parent=11 // pred_check
          %p344 = pneg %p101
        $region18: #{tpu_custom_call.1} parent=11 // pred_check_branch
          %346 = sbr.rel (%p344) target = $region20
        $region19: #{tpu_custom_call.1} parent=11 // pred_region
          _
        $region20: #{tpu_custom_call.1} parent=11 // pred_fallthru
          _
        // Predicated region
        $region21: #{tpu_custom_call.1} parent=11 // pred_check
          %p347 = pneg %p174
        $region22: #{tpu_custom_call.1} parent=11 // pred_check_branch
          %349 = sbr.rel (%p347) target = $region24
        $region23: #{tpu_custom_call.1} parent=11 // pred_region
          _
        $region24: #{tpu_custom_call.1} parent=11 // pred_fallthru
          _
        // Predicated region
        $region25: #{tpu_custom_call.1} parent=11 // pred_check
          %p350 = pneg %p195
        $region26: #{tpu_custom_call.1} parent=11 // pred_check_branch
          %352 = sbr.rel (%p350) target = $region28
        $region27: #{tpu_custom_call.1} parent=11 // pred_region
          _
        $region28: #{tpu_custom_call.1} parent=11 // pred_fallthru
          _
        // Predicated region
        $region29: #{tpu_custom_call.1} parent=11 // pred_check
          %p353 = pneg %p216
        $region30: #{tpu_custom_call.1} parent=11 // pred_check_branch
          %355 = sbr.rel (%p353) target = $region32
        $region31: #{tpu_custom_call.1} parent=11 // pred_region
          _
        $region32: #{tpu_custom_call.1} parent=11 // pred_fallthru
          _
        // Predicated region
        $region33: #{tpu_custom_call.1} parent=11 // pred_check
          %p356 = pneg %p237
        $region34: #{tpu_custom_call.1} parent=11 // pred_check_branch
          %358 = sbr.rel (%p356) target = $region36
        $region35: #{tpu_custom_call.1} parent=11 // pred_region
          _
        $region36: #{tpu_custom_call.1} parent=11 // pred_fallthru
          _
        // Predicated region
        $region37: #{tpu_custom_call.1} parent=11 // pred_check
          %p359 = pneg %p258
        $region38: #{tpu_custom_call.1} parent=11 // pred_check_branch
          %361 = sbr.rel (%p359) target = $region40
        $region39: #{tpu_custom_call.1} parent=11 // pred_region
          _
        $region40: #{tpu_custom_call.1} parent=11 // pred_fallthru
          _
        // Predicated region
        $region41: #{tpu_custom_call.1} parent=11 // pred_check
          %p362 = pneg %p279
        $region42: #{tpu_custom_call.1} parent=11 // pred_check_branch
          %364 = sbr.rel (%p362) target = $region44
        $region43: #{tpu_custom_call.1} parent=11 // pred_region
          _
        $region44: #{tpu_custom_call.1} parent=11 // pred_fallthru
          _
        // Predicated region
        $region45: #{tpu_custom_call.1} parent=11 // pred_check
          %p365 = pneg %p300
        $region46: #{tpu_custom_call.1} parent=11 // pred_check_branch
          %367 = sbr.rel (%p365) target = $region48
        $region47: #{tpu_custom_call.1} parent=11 // pred_region
          _
        $region48: #{tpu_custom_call.1} parent=11 // pred_fallthru
          _
      $region12: #{tpu_custom_call.1} parent=5 // pred_fallthru
        _
      %p368 = scmp.lt.s32.totalorder %s21, 8
      // Predicated region
      $region49: #{tpu_custom_call.1} parent=5 // pred_check
        %p369 = pneg %p368
      $region50: #{tpu_custom_call.1} parent=5 // pred_check_branch
        %371 = sbr.rel (%p369) target = $region52
      $region51: #{tpu_custom_call.1} parent=5 // pred_region
        // Predicated region
        $region53: #{tpu_custom_call.1} parent=51 // pred_check
          %p372 = pneg %p53
        $region54: #{tpu_custom_call.1} parent=51 // pred_check_branch
          %374 = sbr.rel (%p372) target = $region56
        $region55: #{tpu_custom_call.1} parent=51 // pred_region
          %p375 = scmp.lt.s32.totalorder %s28, 1
          %s376 = scalar_select %p375, %s28, 1
          %s377 = smul.addr %s376, 8
          %s378 = scalar_lea.vmem %s0, %s377
        $region56: #{tpu_custom_call.1} parent=51 // pred_fallthru
          _
        // Predicated region
        $region57: #{tpu_custom_call.1} parent=51 // pred_check
          %p379 = pneg %p121
        $region58: #{tpu_custom_call.1} parent=51 // pred_check_branch
          %381 = sbr.rel (%p379) target = $region60
        $region59: #{tpu_custom_call.1} parent=51 // pred_region
          %p382 = scmp.lt.s32.totalorder %s29, 3
          %s383 = scalar_select %p382, %s29, 3
          %s384 = smul.addr %s383, 4
          %s385 = smul.addr %s384, 4
          %s386 = scalar_lea.vmem %s3, %s385
        $region60: #{tpu_custom_call.1} parent=51 // pred_fallthru
          _
        // Predicated region
        $region61: #{tpu_custom_call.1} parent=51 // pred_check
          %p387 = pneg %p147
        $region62: #{tpu_custom_call.1} parent=51 // pred_check_branch
          %389 = sbr.rel (%p387) target = $region64
        $region63: #{tpu_custom_call.1} parent=51 // pred_region
          %p390 = scmp.lt.s32.totalorder %s29, 3
          %s391 = scalar_select %p390, %s29, 3
          %s392 = smul.addr %s391, 4
          %s393 = scalar_lea.vmem %s4, %s392
        $region64: #{tpu_custom_call.1} parent=51 // pred_fallthru
          _
      $region52: #{tpu_custom_call.1} parent=5 // pred_fallthru
        _
      %p394 = scmp.le.s32.totalorder 1, %s21
      %p395 = scmp.lt.s32.totalorder %s21, 9
      %p396 = pnand %p394, %p395
      %p397 = pneg %p396
      // Predicated region
      $region65: #{tpu_custom_call.1} parent=5 // pred_check
        _
      $region66: #{tpu_custom_call.1} parent=5 // pred_check_branch
        %399 = sbr.rel (%p396) target = $region68
      $region67: #{tpu_custom_call.1} parent=5 // pred_region
        %s400 = ssub.s32 %s21, 1
        %p401 = scmp.lt.s32.totalorder %s30, 1
        %s402 = scalar_select %p401, %s30, 1
        %s403 = smul.addr %s402, 8
        %s404 = scalar_lea.vmem %s0, %s403
        %p405 = pneg %p59
        %p406 = pneg %p56
        %p407 = pneg %p80
        %p408 = pneg %p77
        %p409 = pneg %p101
        %p410 = pneg %p98
        %p411 = scmp.lt.s32.totalorder %s31, 3
        %s412 = scalar_select %p411, %s31, 3
        %s413 = smul.addr %s412, 4
        %s414 = smul.addr %s413, 4
        %s415 = scalar_lea.vmem %s3, %s414
        %p416 = pneg %p127
        %p417 = pneg %p124
        %p418 = scmp.lt.s32.totalorder %s31, 3
        %s419 = scalar_select %p418, %s31, 3
        %s420 = smul.addr %s419, 4
        %s421 = scalar_lea.vmem %s4, %s420
        %p422 = pneg %p153
        %p423 = pneg %p150
        %p424 = pneg %p174
        %p425 = pneg %p171
        %p426 = pneg %p195
        %p427 = pneg %p192
        %p428 = pneg %p216
        %p429 = pneg %p213
        %p430 = pneg %p237
        %p431 = pneg %p234
        %p432 = pneg %p258
        %p433 = pneg %p255
        %p434 = pneg %p279
        %p435 = pneg %p276
        %p436 = pneg %p300
        %p437 = pneg %p297
        %p438 = pneg %p326
        %p439 = pneg %p323
        %s440 = sand.u32 %s313, 1
        %s441 = scalar_lea.sflag [#allocation5], %s440
        %s442 = sand.u32 %s313, 1
        %s443 = smul.addr %s442, 8
        %s444 = scalar_lea.vmem [#allocation4], %s443
        %p445 = scmp.lt.s32.totalorder %s30, 1
        %s446 = scalar_select %p445, %s30, 1
        %s447 = smul.addr %s446, 8
        %s448 = scalar_lea.vmem %s0, %s447
        %p449 = scmp.lt.s32.totalorder %s31, 3
        %s450 = scalar_select %p449, %s31, 3
        %s451 = smul.addr %s450, 4
        %s452 = smul.addr %s451, 4
        %s453 = scalar_lea.vmem %s3, %s452
        %p454 = scmp.lt.s32.totalorder %s31, 3
        %s455 = scalar_select %p454, %s31, 3
        %s456 = smul.addr %s455, 4
        %s457 = scalar_lea.vmem %s4, %s456
        %p459 = scmp.eq.s32.totalorder %s31, 0
        // Predicated region
        $region69: #{tpu_custom_call.1} parent=67 // pred_check
          %p460 = pneg %p459
        $region70: #{tpu_custom_call.1} parent=67 // pred_check_branch
          %462 = sbr.rel (%p460) target = $region72
        $region71: #{tpu_custom_call.1} parent=67 // pred_region
          %v463 = vld [vmem:[%s448] sm:$0xff]
          %v464 = vld [vmem:[%s1] sm:$0x1]
          %v465 = vld [vmem:[%s2] sm:$0x1]
          %vm466 = vcmask 261120
          %v467 = vsel %vm466, %v463, 0.0
          %468 = vadd.xlane.f32.xlu0 %v467
          %v469 = vpop.xlane.xlu0 %468
          %v470 = vrcp.pop 32.0
          %v471 = vmul.f32 32.0, %v470
          %v472 = vsub.f32 1.0, %v471
          %v473 = vmul.f32 %v470, %v472
          %v474 = vadd.f32 %v470, %v473
          %vm475 = vweird.f32 %v470
          %v476 = vsel %vm475, %v470, %v474
          %v477 = vmul.f32 %v469, %v476
          %v478 = vsub.f32 %v463, %v477
          %v479 = vmul.f32 %v478, %v478
          %v480 = vsel %vm466, %v479, 0.0
          %481 = vadd.xlane.f32.xlu0 %v480
          %v482 = vpop.xlane.xlu0 %481
          %v483 = vmul.f32 %v482, %v476
          %v484 = vadd.f32 %v483, 1e-05
          %v485 = vrsqrt.pop %v484
          %v486 = vmul.f32 %v485, %v484
          %v487 = vmul.f32 %v486, %v485
          %v488 = vmul.f32 0.5, %v487
          %v489 = vsub.f32 1.5, %v488
          %v490 = vmul.f32 %v485, %v489
          %vm491 = vweird.f32 %v484
          %vm492 = vweird.f32 %v485
          %vm493 = vmor %vm491, %vm492
          %v494 = vsel %vm493, %v485, %v490
          %v495 = vmul.f32 %v478, %v494
          %v497 = vperm.slane %v464, 0
          %v499 = vmul.f32 %v495, %v497
          %v501 = vperm.slane %v465, 0
          %v503 = vadd.f32 %v499, %v501
          %v504 = vpack.c.bf16 %v503, %v503
          %vm505 = vcmask 257024
          %506 = vst.msk [vmem:[#allocation2] sm:$0xf] %vm505, %v504
          %507 = vst.msk [vmem:[#allocation3] sm:$0xff] %vm466, 0.0
        $region72: #{tpu_custom_call.1} parent=67 // pred_fallthru
          _
        %v508 = vld [vmem:[#allocation2] sm:$0xf]
        %v509 = vld [vmem:[%s453] sm:$0xf]
        %v510 = vld [vmem:[%s453 + $0x4] sm:$0xf]
        %v511 = vld [vmem:[%s453 + $0x8] sm:$0xf]
        %v512 = vld [vmem:[%s453 + $0xc] sm:$0xf]
        %v517 = vunpack.c.l.b16 %v509
        %v518 = vunpack.c.l.b16 %v510
        %v519 = vunpack.c.l.b16 %v511
        %v520 = vunpack.c.l.b16 %v512
        %v521 = vpack.c.b16 %v518, %v517
        %v522 = vpack.c.b16 %v520, %v519
        %vm525 = vcmask 261120
        %v527 = vsel %vm525, %v508, 0
        %529 = vmatpush.bf16.msra.mxu0 0
        %530 = vmatpush.bf16.msra.mxu0 0
        %531 = vmatpush.bf16.msra.mxu0 0
        %532 = vmatpush.bf16.msra.mxu0 0
        %533 = vmatpush.bf16.msra.mxu0 0
        %534 = vmatpush.bf16.msra.mxu0 0
        %535 = vmatpush.bf16.msra.mxu0 %v522
        %536 = vmatpush.bf16.msra.mxu0 %v521
        %537 = vmatmul.bf16.gmra.mxu0 %v527
        %v538 = vpop.f32.mrf.mxu0
        %v539 = vadd.f32 0.0, %v538
        %v540 = vpop.f32.mrf.mxu0
        %541 = vdwg.mxu0
        %v542 = vpack.c.bf16 %v539, %v539
        %v544 = vunpack.c.l.b16 %v542
        %v545 = vpack.c.b16 %v544, %v544
        %546 = vrot.lane.b32.xlu0 %v545, 120
        %v547 = vpop.permute.xlu0 %546
        %vm548 = vcmask 64512
        %v550 = vsel %vm548, %v542, 0
        %v553 = vsel %vm548, %v547, 0
        %555 = vmatpush.bf16.xpose.msra.mxu0 0
        %556 = vmatpush.bf16.xpose.msra.mxu0 0
        %557 = vmatpush.bf16.xpose.msra.mxu0 0
        %558 = vmatpush.bf16.xpose.msra.mxu0 0
        %559 = vmatpush.bf16.xpose.msra.mxu0 0
        %560 = vmatpush.bf16.xpose.msra.mxu0 0
        %561 = vmatpush.bf16.xpose.msra.mxu0 0
        %562 = vmatpush.bf16.xpose.msra.mxu0 %v553
        %563 = vmatmul.bf16.gmra.mxu0 %v550
        %v564 = vpop.f32.mrf.mxu0
        %v565 = vadd.f32 0.0, %v564
        %v566 = vpop.f32.mrf.mxu0
        %567 = vdwg.mxu0
        %v568 = vsel %vm548, %v565, -inf
        %569 = vmax.xlane.f32.xlu0 %v568
        %v570 = vpop.xlane.xlu0 %569
        %v571 = vsub.f32 %v565, %v570
        %v572 = vmul.f32 %v571, 1.442695
        %v573 = vpow.pop %v572
        %v574 = vsel %vm548, %v573, 0.0
        %575 = vadd.xlane.f32.xlu0 %v574
        %v576 = vpop.xlane.xlu0 %575
        %v577 = vrcp.pop %v576
        %v578 = vmul.f32 %v573, %v577
        %v579 = vpack.c.bf16 %v578, %v578
        %580 = vrot.lane.b32.xlu0 %v545, 112
        %v581 = vpop.permute.xlu0 %580
        %v583 = vsel %vm548, %v579, 0
        %vm585 = vcmask 1043456
        %v587 = vsel %vm585, %v581, 0
        %589 = vmatpush.bf16.msra.mxu0 0
        %590 = vmatpush.bf16.msra.mxu0 0
        %591 = vmatpush.bf16.msra.mxu0 0
        %592 = vmatpush.bf16.msra.mxu0 0
        %593 = vmatpush.bf16.msra.mxu0 0
        %594 = vmatpush.bf16.msra.mxu0 0
        %595 = vmatpush.bf16.msra.mxu0 0
        %596 = vmatpush.bf16.msra.mxu0 %v587
        %597 = vmatmul.bf16.gmra.mxu0 %v583
        %v598 = vpop.f32.mrf.mxu0
        %v599 = vadd.f32 0.0, %v598
        %v600 = vpop.f32.mrf.mxu0
        %601 = vdwg.mxu0
        %v602 = vld [vmem:[#allocation3] sm:$0xff]
        %v603 = vpack.c.bf16 %v599, %v599
        %v604 = vld [vmem:[%s457] sm:$0xf]
        %v606 = vsel %vm548, %v603, 0
        %v609 = vsel %vm585, %v604, 0
        %611 = vmatpush.bf16.msra.mxu0 0
        %612 = vmatpush.bf16.msra.mxu0 0
        %613 = vmatpush.bf16.msra.mxu0 0
        %614 = vmatpush.bf16.msra.mxu0 0
        %615 = vmatpush.bf16.msra.mxu0 0
        %616 = vmatpush.bf16.msra.mxu0 0
        %617 = vmatpush.bf16.msra.mxu0 0
        %618 = vmatpush.bf16.msra.mxu0 %v609
        %619 = vmatmul.bf16.gmra.mxu0 %v606
        %v620 = vpop.f32.mrf.mxu0
        %v621 = vadd.f32 0.0, %v620
        %v622 = vpop.f32.mrf.mxu0
        %623 = vdwg.mxu0
        %v624 = vadd.f32 %v602, %v621
        %625 = vst.msk [vmem:[#allocation3] sm:$0xff] %vm525, %v624
        %p626 = scmp.eq.s32.totalorder %s31, 3
        // Predicated region
        $region73: #{tpu_custom_call.1} parent=67 // pred_check
          %p627 = pneg %p626
        $region74: #{tpu_custom_call.1} parent=67 // pred_check_branch
          %629 = sbr.rel (%p627) target = $region76
        $region75: #{tpu_custom_call.1} parent=67 // pred_region
          %v630 = vld [vmem:[%s448] sm:$0xff]
          %v631 = vld [vmem:[#allocation3] sm:$0xff]
          %v632 = vadd.f32 %v630, %v631
          %v633 = vld [vmem:[%s5] sm:$0x1]
          %v635 = vperm.slane %v633, 0
          %v637 = vadd.f32 %v632, %v635
          %v638 = vld [vmem:[%s6] sm:$0x1]
          %v639 = vld [vmem:[%s7] sm:$0x1]
          %v640 = vsel %vm525, %v637, 0.0
          %641 = vadd.xlane.f32.xlu0 %v640
          %v642 = vpop.xlane.xlu0 %641
          %v643 = vrcp.pop 32.0
          %v644 = vmul.f32 32.0, %v643
          %v645 = vsub.f32 1.0, %v644
          %v646 = vmul.f32 %v643, %v645
          %v647 = vadd.f32 %v643, %v646
          %vm648 = vweird.f32 %v643
          %v649 = vsel %vm648, %v643, %v647
          %v650 = vmul.f32 %v642, %v649
          %v651 = vsub.f32 %v637, %v650
          %v652 = vmul.f32 %v651, %v651
          %v653 = vsel %vm525, %v652, 0.0
          %654 = vadd.xlane.f32.xlu0 %v653
          %v655 = vpop.xlane.xlu0 %654
          %v656 = vmul.f32 %v655, %v649
          %v657 = vadd.f32 %v656, 1e-05
          %v658 = vrsqrt.pop %v657
          %v659 = vmul.f32 %v658, %v657
          %v660 = vmul.f32 %v659, %v658
          %v661 = vmul.f32 0.5, %v660
          %v662 = vsub.f32 1.5, %v661
          %v663 = vmul.f32 %v658, %v662
          %vm664 = vweird.f32 %v657
          %vm665 = vweird.f32 %v658
          %vm666 = vmor %vm664, %vm665
          %v667 = vsel %vm666, %v658, %v663
          %v668 = vmul.f32 %v651, %v667
          %v670 = vperm.slane %v638, 0
          %v672 = vmul.f32 %v668, %v670
          %v674 = vperm.slane %v639, 0
          %v676 = vadd.f32 %v672, %v674
          %v677 = vpack.c.bf16 %v676, %v676
          %v678 = vld [vmem:[%s8] sm:$0xf]
          %v679 = vld [vmem:[%s8 + $0x4] sm:$0xf]
          %v680 = vld [vmem:[%s8 + $0x8] sm:$0xf]
          %v681 = vld [vmem:[%s8 + $0xc] sm:$0xf]
          %v682 = vld [vmem:[%s9] sm:$0x1]
          %v684 = vperm.slane %v682, 0
          %v690 = vunpack.c.l.b16 %v678
          %v691 = vunpack.c.l.b16 %v679
          %v692 = vunpack.c.l.b16 %v680
          %v693 = vunpack.c.l.b16 %v681
          %v694 = vpack.c.b16 %v691, %v690
          %v695 = vpack.c.b16 %v693, %v692
          %v699 = vsel %vm525, %v677, 0
          %701 = vmatpush.bf16.msra.mxu0 0
          %702 = vmatpush.bf16.msra.mxu0 0
          %703 = vmatpush.bf16.msra.mxu0 0
          %704 = vmatpush.bf16.msra.mxu0 0
          %705 = vmatpush.bf16.msra.mxu0 0
          %706 = vmatpush.bf16.msra.mxu0 0
          %707 = vmatpush.bf16.msra.mxu0 %v695
          %708 = vmatpush.bf16.msra.mxu0 %v694
          %709 = vmatmul.bf16.gmra.mxu0 %v699
          %v710 = vpop.f32.mrf.mxu0
          %v711 = vadd.f32 %v684, %v710
          %v712 = vpop.f32.mrf.mxu0
          %713 = vdwg.mxu0
          %v714 = vmax.f32 %v711, 0.0
          %v715 = vpack.c.bf16 %v714, %v714
          %v716 = vld [vmem:[%s10] sm:$0xf]
          %v717 = vld [vmem:[%s10 + $0x4] sm:$0xf]
          %v718 = vld [vmem:[%s10 + $0x8] sm:$0xf]
          %v719 = vld [vmem:[%s10 + $0xc] sm:$0xf]
          %v720 = vld [vmem:[%s10 + $0x10] sm:$0xf]
          %v721 = vld [vmem:[%s10 + $0x14] sm:$0xf]
          %v722 = vld [vmem:[%s10 + $0x18] sm:$0xf]
          %v723 = vld [vmem:[%s10 + $0x1c] sm:$0xf]
          %v724 = vld [vmem:[%s10 + $0x20] sm:$0xf]
          %v725 = vld [vmem:[%s10 + $0x24] sm:$0xf]
          %v726 = vld [vmem:[%s10 + $0x28] sm:$0xf]
          %v727 = vld [vmem:[%s10 + $0x2c] sm:$0xf]
          %v728 = vld [vmem:[%s10 + $0x30] sm:$0xf]
          %v729 = vld [vmem:[%s10 + $0x34] sm:$0xf]
          %v730 = vld [vmem:[%s10 + $0x38] sm:$0xf]
          %v731 = vld [vmem:[%s10 + $0x3c] sm:$0xf]
          %v732 = vld [vmem:[%s11] sm:$0x1]
          %v734 = vperm.slane %v732, 0
          %v752 = vunpack.c.l.b16 %v716
          %v753 = vunpack.c.l.b16 %v717
          %v754 = vunpack.c.l.b16 %v718
          %v755 = vunpack.c.l.b16 %v719
          %v756 = vunpack.c.l.b16 %v720
          %v757 = vunpack.c.l.b16 %v721
          %v758 = vunpack.c.l.b16 %v722
          %v759 = vunpack.c.l.b16 %v723
          %v760 = vunpack.c.l.b16 %v724
          %v761 = vunpack.c.l.b16 %v725
          %v762 = vunpack.c.l.b16 %v726
          %v763 = vunpack.c.l.b16 %v727
          %v764 = vunpack.c.l.b16 %v728
          %v765 = vunpack.c.l.b16 %v729
          %v766 = vunpack.c.l.b16 %v730
          %v767 = vunpack.c.l.b16 %v731
          %v768 = vpack.c.b16 %v753, %v752
          %v769 = vpack.c.b16 %v755, %v754
          %v770 = vpack.c.b16 %v757, %v756
          %v771 = vpack.c.b16 %v759, %v758
          %v772 = vpack.c.b16 %v761, %v760
          %v773 = vpack.c.b16 %v763, %v762
          %v774 = vpack.c.b16 %v765, %v764
          %v775 = vpack.c.b16 %v767, %v766
          %784 = vmatpush.bf16.msra.mxu0 %v775
          %785 = vmatpush.bf16.msra.mxu0 %v774
          %786 = vmatpush.bf16.msra.mxu0 %v773
          %787 = vmatpush.bf16.msra.mxu0 %v772
          %788 = vmatpush.bf16.msra.mxu0 %v771
          %789 = vmatpush.bf16.msra.mxu0 %v770
          %790 = vmatpush.bf16.msra.mxu0 %v769
          %791 = vmatpush.bf16.msra.mxu0 %v768
          %792 = vmatmul.bf16.gmra.mxu0 %v715
          %v793 = vpop.f32.mrf.mxu0
          %v794 = vadd.f32 %v734, %v793
          %v795 = vpop.f32.mrf.mxu0
          %796 = vdwg.mxu0
          %v797 = vadd.f32 %v637, %v794
          %798 = vst.msk [vmem:[%s444] sm:$0xff] %vm525, %v797
        $region76: #{tpu_custom_call.1} parent=67 // pred_fallthru
          _
        %s799 = sand.u32 %s313, 1
        %s800 = scalar_lea.sflag [#allocation5], %s799
        %s801 = sand.u32 %s313, 1
        %s802 = smul.addr %s801, 8
        %s803 = scalar_lea.vmem [#allocation4], %s802
        // Predicated region
        $region77: #{tpu_custom_call.1} parent=67 // pred_check
          %p804 = pneg %p323
        $region78: #{tpu_custom_call.1} parent=67 // pred_check_branch
          %806 = sbr.rel (%p804) target = $region80
        $region79: #{tpu_custom_call.1} parent=67 // pred_region
          %808 = vsyncadd %s800, 0
          %s809 = smul.addr %s30, 8
          %s810 = scalar_lea.hbm %s12, %s809
          %s812 = sshll.u32 %s803, 4
          %s813 = int_to_ptr.vmem [resolvable:$true] %s812
          %s814 = sshll.u32 %s810, 4
          %s815 = int_to_ptr.hbm [resolvable:$true] %s814
          %817 = dma.vmem_to_hbm [thread:$0]  %s813, 128, %s815, %s800
        $region80: #{tpu_custom_call.1} parent=67 // pred_fallthru
          _
      $region68: #{tpu_custom_call.1} parent=5 // pred_fallthru
        _
      %p818 = scmp.le.s32.totalorder 2, %s21
      // Predicated region
      $region81: #{tpu_custom_call.1} parent=5 // pred_check
        %p819 = pneg %p818
      $region82: #{tpu_custom_call.1} parent=5 // pred_check_branch
        %821 = sbr.rel (%p819) target = $region84
      $region83: #{tpu_custom_call.1} parent=5 // pred_region
        %s822 = ssub.s32 %s21, 2
        // Predicated region
        $region85: #{tpu_custom_call.1} parent=83 // pred_check
          %p823 = pneg %p329
        $region86: #{tpu_custom_call.1} parent=83 // pred_check_branch
          %825 = sbr.rel (%p823) target = $region88
        $region87: #{tpu_custom_call.1} parent=83 // pred_region
          %s826 = sand.u32 %s314, 1
          %s827 = scalar_lea.sflag [#allocation5], %s826
          %s828 = sand.u32 %s314, 1
          %s829 = smul.addr %s828, 8
          %s830 = scalar_lea.vmem [#allocation4], %s829
          %832 = dma.done %s827, 128
        $region88: #{tpu_custom_call.1} parent=83 // pred_fallthru
          _
      $region84: #{tpu_custom_call.1} parent=5 // pred_fallthru
        _
    $region6: #{tpu_custom_call.1} parent=1 // loop_footer
      %s25 = sadd.s32 1, %s21
    $region7: #{tpu_custom_call.1} parent=1 // loop_footer_branch
      %20 = sbr.rel target = $region3
    $region8: #{tpu_custom_call.1} parent=1 // loop_exit
      _
    %833 = vsyncpa [#allocation5], 1
    %s834 = scalar_lea.sflag [#allocation5], 1
    %835 = vsyncpa %s834, 1

</llo_original>
